<compile_context>
chip_gen: v5e
topology: v5e:2x2
jax: 0.10.0
libtpu: 0.0.40
codegen_flags: <defaults>
</compile_context>

<pallas_src>
import math
import functools

import jax
import jax.numpy as jnp
from jax import lax
from jax.experimental import pallas as pl
from jax.experimental.pallas import tpu as pltpu

NEG_INF = -1e9   # stand-in for -inf in masked_fill before softmax
LN_EPS = 1e-5    # PyTorch nn.LayerNorm default


def _layernorm(x, gamma, beta, eps=LN_EPS):
    mu = jnp.mean(x, axis=-1, keepdims=True)
    var = jnp.mean((x - mu) ** 2, axis=-1, keepdims=True)
    return (x - mu) * lax.rsqrt(var + eps) * gamma + beta


# ----------------------------------------------------------------------------
# Fused encoder kernel: input projection + mask + all N encoder layers.
# grid = (B // TB, N_layers); activation (TB*S, d_model) lives in VMEM scratch
# across the layer axis; per-layer weights are streamed by the BlockSpec pipeline.
# ----------------------------------------------------------------------------
def fused_encoder_kernel(
    # inputs
    x_ref, fcw_ref, fcb_ref, fcg_ref, fcbe_ref,
    wqkv_ref, bqkv_ref, wo_ref, w1_ref, b1_ref, w2_ref, vecs_ref,
    # outputs
    out_ref, mask_ref,
    # scratch
    act_sc, att_sc, mbias_sc,
    *, n_heads, d_k, d_v, padding_idx):
    layer = pl.program_id(1)
    TB, S, _ = x_ref.shape
    hdk = n_heads * d_k
    hdv = n_heads * d_v
    d_model = fcw_ref.shape[1]

    # ---- layer 0 only: input projection + key-mask construction --------------
    @pl.when(layer == 0)
    def _input_projection():
        fcw, fcb = fcw_ref[...], fcb_ref[...]
        fcg, fcbe = fcg_ref[...], fcbe_ref[...]
        for t in range(TB):                                   # static, small
            x_t = x_ref[t]                                    # (S, d_in) f32
            h = jnp.dot(x_t.astype(jnp.bfloat16), fcw,
                        preferred_element_type=jnp.float32) + fcb
            h = jnp.maximum(h, 0.0)                           # ReLU
            # TODO(synk): dropout layers are identity (inference / eval mode)
            h = _layernorm(h, fcg, fcbe)
            pad = jnp.sum(x_t, axis=-1, keepdims=True) == 0.0  # (S, 1)
            h = jnp.where(pad, 0.0, h)                         # masked_fill
            act_sc[t * S:(t + 1) * S, :] = h

            # attention_mask = (sum(out, -1) == padding_idx), kept as a (1, S)
            # key row (broadcasts over queries).  Sum along lanes, transpose
            # only the tiny (S, 1) result (no full (S, d_model) transpose).
            key_sums = jnp.sum(h, axis=-1, keepdims=True)      # (S, 1) f32
            is_pad = jnp.where(key_sums == padding_idx, 1.0, 0.0)
            is_pad_row = is_pad.T                              # (1, S) f32
            mbias_sc[t:t + 1, :] = is_pad_row * NEG_INF
            mask_ref[t] = is_pad_row

    # ---- one encoder layer (runs every grid step) ----------------------------
    y = act_sc[...]                                           # (TB*S, d_model) f32

    # fused QKV projection on the whole batch-tile slab (1/sqrt(d_k) pre-folded
    # into the Wq / bq columns at pack time).
    qkv = jnp.dot(y.astype(jnp.bfloat16), wqkv_ref[0],
                  preferred_element_type=jnp.float32) + bqkv_ref[0]
    wo = wo_ref[0]                                            # (h*d_v, d_model) bf16

    # per-sequence, per-head attention.
    # TODO(synk): batched-head dot_general via pltpu.einshape would remove this
    # static loop and the <128-lane q/k/v column slices.
    for t in range(TB):
        qkv_t = qkv[t * S:(t + 1) * S, :]                     # (S, 2*hdk+hdv)
        mrow = mbias_sc[t:t + 1, :]                           # (1, S) additive key mask
        acc = jnp.zeros((S, d_model), jnp.float32)
        for i in range(n_heads):
            qh = qkv_t[:, i * d_k:(i + 1) * d_k].astype(jnp.bfloat16)
            kh = qkv_t[:, hdk + i * d_k: hdk + (i + 1) * d_k].astype(jnp.bfloat16)
            vh = qkv_t[:, 2 * hdk + i * d_v: 2 * hdk + (i + 1) * d_v].astype(jnp.bfloat16)
            # q @ k^T without an explicit transpose: contract last dims.
            s = lax.dot_general(qh, kh, (((1,), (1,)), ((), ())),
                                preferred_element_type=jnp.float32)
            s = s + mrow
            s = s - jnp.max(s, axis=-1, keepdims=True)
            p = jnp.exp(s)
            p = p * pl.reciprocal(jnp.sum(p, axis=-1, keepdims=True), approx=True)
            o = jnp.dot(p.astype(jnp.bfloat16), vh,
                        preferred_element_type=jnp.float32)   # (S, d_v)
            # concat(heads) @ Wo  ==  sum_h head_h @ Wo_rows_h  (no heads slab,
            # no masked sub-128-lane stores).
            acc = acc + jnp.dot(o.astype(jnp.bfloat16), wo[i * d_v:(i + 1) * d_v, :],
                                preferred_element_type=jnp.float32)
        att_sc[t * S:(t + 1) * S, :] = acc

    # packed per-layer d_model-wide vectors: [bo, g1, be1, b2, g2, be2]
    vecs = vecs_ref[0]                                        # (6, d_model) f32
    bo, g1, be1 = vecs[0:1], vecs[1:2], vecs[2:3]
    b2, g2, be2 = vecs[3:4], vecs[4:5], vecs[5:6]

    y1 = _layernorm(y + att_sc[...] + bo, g1, be1)            # Add & Norm (fp32)

    ff = jnp.dot(y1.astype(jnp.bfloat16), w1_ref[0],
                 preferred_element_type=jnp.float32) + b1_ref[0]
    ff = jnp.maximum(ff, 0.0)
    ff = jnp.dot(ff.astype(jnp.bfloat16), w2_ref[0],
                 preferred_element_type=jnp.float32) + b2
    y2 = _layernorm(y1 + ff, g2, be2)                         # Add & Norm (fp32)
    act_sc[...] = y2

    @pl.when(layer == pl.num_programs(1) - 1)
    def _write_out():
        for t in range(TB):
            out_ref[t] = act_sc[t * S:(t + 1) * S, :].astype(out_ref.dtype)


# ----------------------------------------------------------------------------
# Wrapper: single pallas_call for the full TransformerEncoder forward
# ----------------------------------------------------------------------------
def _pick_batch_tile(B, max_tile=8):
    for t in range(min(B, max_tile), 0, -1):
        if B % t == 0:
            return t
    return 1


def transformer_encoder_forward(x, fc_packed, layers_packed, *, padding_idx,
                                n_heads, d_k, d_v, batch_tile=None):
    B, S, d_in = x.shape
    d_model = fc_packed["w"].shape[1]
    N = layers_packed["wqkv"].shape[0]
    d_ff = layers_packed["w1"].shape[2]
    hdk, hdv = n_heads * d_k, n_heads * d_v
    wqkv_w = layers_packed["wqkv"].shape[2]

    TB = batch_tile if batch_tile is not None else _pick_batch_tile(B)
    assert B % TB == 0, "batch must be divisible by the batch tile"

    kernel = functools.partial(fused_encoder_kernel, n_heads=n_heads, d_k=d_k,
                               d_v=d_v, padding_idx=float(padding_idx))

    def fixed(shape):       # weights shared across all grid steps (fetched once)
        return pl.BlockSpec(shape, lambda g, l, _n=len(shape): (0,) * _n)

    def per_layer(shape):   # stacked per-layer weights, leading layer axis
        return pl.BlockSpec((1,) + shape,
                            lambda g, l, _n=len(shape): (l,) + (0,) * _n)

    out, mask_f = pl.pallas_call(
        kernel,
        out_shape=(jax.ShapeDtypeStruct((B, S, d_model), jnp.float32),
                   jax.ShapeDtypeStruct((B, 1, S), jnp.float32)),
        grid_spec=pltpu.PrefetchScalarGridSpec(
            num_scalar_prefetch=0,
            grid=(B // TB, N),
            in_specs=[
                pl.BlockSpec((TB, S, d_in), lambda g, l: (g, 0, 0)),      # x
                fixed((d_in, d_model)), fixed((1, d_model)),              # fc w, b
                fixed((1, d_model)), fixed((1, d_model)),                 # ln gamma, beta
                per_layer((d_model, wqkv_w)),                             # Wqkv (fused, q pre-scaled)
                per_layer((1, wqkv_w)),                                   # bqkv
                per_layer((hdv, d_model)),                                # Wo
                per_layer((d_model, d_ff)), per_layer((1, d_ff)),         # W1, b1
                per_layer((d_ff, d_model)),                               # W2
                per_layer((6, d_model)),                                  # packed [bo,g1,be1,b2,g2,be2]
            ],
            out_specs=(pl.BlockSpec((TB, S, d_model), lambda g, l: (g, 0, 0)),
                       pl.BlockSpec((TB, 1, S), lambda g, l: (g, 0, 0))),
            scratch_shapes=[
                pltpu.VMEM((TB * S, d_model), jnp.float32),   # resident activation
                pltpu.VMEM((TB * S, d_model), jnp.float32),   # attention output slab
                pltpu.VMEM((TB, S), jnp.float32),             # additive key-mask bias
            ]),
        compiler_params=pltpu.CompilerParams(
            dimension_semantics=("parallel", "arbitrary"),
            # 48 MiB is safe on v5e/v6e (128 MiB physical) and within v7x's 64 MiB.
            vmem_limit_bytes=48 * 1024 * 1024),
    )(x,
      fc_packed["w"], fc_packed["b"], fc_packed["gamma"], fc_packed["beta"],
      layers_packed["wqkv"], layers_packed["bqkv"], layers_packed["wo"],
      layers_packed["w1"], layers_packed["b1"], layers_packed["w2"],
      layers_packed["vecs"])

    attention_mask = (mask_f > 0.5)[:, :, None, :]   # (B, 1, 1, S) bool
    return out, attention_mask


# ----------------------------------------------------------------------------
# Parameter init (PyTorch-style per-layer, fp32) + packing for the kernel
# ----------------------------------------------------------------------------
def init_params(key, *, d_in, d_model, d_k, d_v, n_heads, d_ff, N):
    keys = iter(jax.random.split(key, 4 + 16 * N + 8))
    nrm = lambda shape, s=0.05: (s * jax.random.normal(next(keys), shape)).astype(jnp.float32)

    fc_params = {
        "w": nrm((d_in, d_model)),
        "b": nrm((1, d_model)),
        "gamma": 1.0 + nrm((1, d_model), 0.01),
        "beta": nrm((1, d_model), 0.01),
    }
    layer_params = []
    for _ in range(N):
        layer_params.append({
            "wq": nrm((d_model, n_heads * d_k)), "bq": nrm((1, n_heads * d_k)),
            "wk": nrm((d_model, n_heads * d_k)), "bk": nrm((1, n_heads * d_k)),
            "wv": nrm((d_model, n_heads * d_v)), "bv": nrm((1, n_heads * d_v)),
            "wo": nrm((n_heads * d_v, d_model)), "bo": nrm((1, d_model)),
            "g1": 1.0 + nrm((1, d_model), 0.01), "be1": nrm((1, d_model), 0.01),
            "w1": nrm((d_model, d_ff)), "b1": nrm((1, d_ff)),
            "w2": nrm((d_ff, d_model)), "b2": nrm((1, d_model)),
            "g2": 1.0 + nrm((1, d_model), 0.01), "be2": nrm((1, d_model), 0.01),
        })
    return fc_params, layer_params


def pack_params(fc_params, layer_params_list, *, d_k):
    """Fuse Wq|Wk|Wv (with 1/sqrt(d_k) folded into the Q columns), stack per-layer
    weights, cast matmul weights to bf16, pack the 6 d_model-wide vectors."""
    bf = lambda a: a.astype(jnp.bfloat16)
    stack = lambda name: jnp.stack([p[name] for p in layer_params_list], axis=0)
    scale = 1.0 / math.sqrt(d_k)
    wqkv = jnp.stack([jnp.concatenate([p["wq"] * scale, p["wk"], p["wv"]], axis=1)
                      for p in layer_params_list], axis=0)
    bqkv = jnp.stack([jnp.concatenate([p["bq"] * scale, p["bk"], p["bv"]], axis=1)
                      for p in layer_params_list], axis=0)
    vecs = jnp.stack([jnp.concatenate([p["bo"], p["g1"], p["be1"],
                                       p["b2"], p["g2"], p["be2"]], axis=0)
                      for p in layer_params_list], axis=0)        # (N, 6, d_model)
    fc_packed = {"w": bf(fc_params["w"]), "b": fc_params["b"],
                 "gamma": fc_params["gamma"], "beta": fc_params["beta"]}
    layers_packed = {
        "wqkv": bf(wqkv), "bqkv": bqkv,
        "wo": bf(stack("wo")),
        "w1": bf(stack("w1")), "b1": stack("b1"),
        "w2": bf(stack("w2")),
        "vecs": vecs,
    }
    return fc_packed, layers_packed


# ----------------------------------------------------------------------------
# Pure-JAX fp32 reference of the PyTorch module (for a loose correctness check)
# ----------------------------------------------------------------------------
def reference_forward(x, fc_params, layer_params_list, *, padding_idx,
                      n_heads, d_k, d_v):
    B, S, _ = x.shape
    mask = jnp.sum(x, -1, keepdims=True) == 0.0
    out = jax.nn.relu(x @ fc_params["w"] + fc_params["b"])
    out = _layernorm(out, fc_params["gamma"], fc_params["beta"])
    out = jnp.where(mask, 0.0, out)
    attn_mask = jnp.sum(out, -1) == float(padding_idx)             # (B, S)
    bias = jnp.where(attn_mask, NEG_INF, 0.0)[:, None, None, :]    # (B,1,1,S)

    for p in layer_params_list:
        q = (out @ p["wq"] + p["bq"]).reshape(B, S, n_heads, d_k)
        k = (out @ p["wk"] + p["bk"]).reshape(B, S, n_heads, d_k)
        v = (out @ p["wv"] + p["bv"]).reshape(B, S, n_heads, d_v)
        s = jnp.einsum("bqhd,bkhd->bhqk", q, k) / math.sqrt(d_k) + bias
        pr = jax.nn.softmax(s, axis=-1)
        o = jnp.einsum("bhqk,bkhd->bqhd", pr, v).reshape(B, S, n_heads * d_v)
        att = o @ p["wo"] + p["bo"]
        y1 = _layernorm(out + att, p["g1"], p["be1"])
        ff = jax.nn.relu(y1 @ p["w1"] + p["b1"]) @ p["w2"] + p["b2"]
        out = _layernorm(y1 + ff, p["g2"], p["be2"])
    return out, attn_mask[:, None, None, :]


if __name__ == "__main__":
    # Small shapes consistent with the module's forward
    B, S, d_in = 2, 8, 64
    d_model, d_k, d_v, n_heads, d_ff, N = 32, 8, 8, 4, 64, 2
    padding_idx = 0

    key = jax.random.PRNGKey(0)
    k_x, k_p = jax.random.split(key)

    x = jax.random.normal(k_x, (B, S, d_in), dtype=jnp.float32)
    # make the last 2 tokens of each sequence "padding" (feature sum == 0)
    x = x.at[:, -2:, :].set(0.0)

    fc_params, layer_params_list = init_params(
        k_p, d_in=d_in, d_model=d_model, d_k=d_k, d_v=d_v,
        n_heads=n_heads, d_ff=d_ff, N=N)
    fc_packed, layers_packed = pack_params(fc_params, layer_params_list, d_k=d_k)

    out, attention_mask = transformer_encoder_forward(
        x, fc_packed, layers_packed, padding_idx=padding_idx,
        n_heads=n_heads, d_k=d_k, d_v=d_v)
    out = jax.block_until_ready(out)
    attention_mask = jax.block_until_ready(attention_mask)

    ref_out, ref_mask = reference_forward(
        x, fc_params, layer_params_list, padding_idx=padding_idx,
        n_heads=n_heads, d_k=d_k, d_v=d_v)

    assert out.shape == (B, S, d_model)
    assert attention_mask.shape == (B, 1, 1, S)
    assert attention_mask.dtype == jnp.bool_
    assert bool(jnp.all(jnp.isfinite(out)))
    assert bool(jnp.array_equal(attention_mask, ref_mask))
    # loose tolerance: kernel uses bf16 MXU operands + approx reciprocal
    assert float(jnp.max(jnp.abs(out - ref_out))) < 0.2
    print("KERNEL_OK")
</pallas_src>

<mosaic_0001>
module attributes {stable_mosaic.version = 11 : i64} {
  func.func @fused_encoder_kernel(%arg0: i32, %arg1: i32, %arg2: memref<2x8x64xf32, #tpu.memory_space<vmem>>, %arg3: memref<64x32xbf16, #tpu.memory_space<vmem>>, %arg4: memref<1x32xf32, #tpu.memory_space<vmem>>, %arg5: memref<1x32xf32, #tpu.memory_space<vmem>>, %arg6: memref<1x32xf32, #tpu.memory_space<vmem>>, %arg7: memref<1x32x96xbf16, #tpu.memory_space<vmem>>, %arg8: memref<1x1x96xf32, #tpu.memory_space<vmem>>, %arg9: memref<1x32x32xbf16, #tpu.memory_space<vmem>>, %arg10: memref<1x32x64xbf16, #tpu.memory_space<vmem>>, %arg11: memref<1x1x64xf32, #tpu.memory_space<vmem>>, %arg12: memref<1x64x32xbf16, #tpu.memory_space<vmem>>, %arg13: memref<1x6x32xf32, #tpu.memory_space<vmem>>, %arg14: memref<2x8x32xf32, #tpu.memory_space<vmem>>, %arg15: memref<2x1x8xf32, #tpu.memory_space<vmem>>, %arg16: memref<16x32xf32, #tpu.memory_space<vmem>>, %arg17: memref<16x32xf32, #tpu.memory_space<vmem>>, %arg18: memref<2x8xf32, #tpu.memory_space<vmem>>) attributes {dimension_semantics = [#tpu.dimension_semantics<parallel>, #tpu.dimension_semantics<arbitrary>], iteration_bounds = array<i64: 1, 2>, scalar_prefetch = 0 : i64, scratch_operands = 3 : i64, tpu.core_type = #tpu.core_type<tc>, window_params = [{transform_indices = @transform_0, window_bounds = array<i64: 2, 8, 64>}, {pipeline_mode = #tpu.pipeline_mode<synchronous>, transform_indices = @transform_1, window_bounds = array<i64: 64, 32>}, {pipeline_mode = #tpu.pipeline_mode<synchronous>, transform_indices = @transform_2, window_bounds = array<i64: 1, 32>}, {pipeline_mode = #tpu.pipeline_mode<synchronous>, transform_indices = @transform_3, window_bounds = array<i64: 1, 32>}, {pipeline_mode = #tpu.pipeline_mode<synchronous>, transform_indices = @transform_4, window_bounds = array<i64: 1, 32>}, {transform_indices = @transform_5, window_bounds = array<i64: 1, 32, 96>}, {transform_indices = @transform_6, window_bounds = array<i64: 1, 1, 96>}, {transform_indices = @transform_7, window_bounds = array<i64: 1, 32, 32>}, {transform_indices = @transform_8, window_bounds = array<i64: 1, 32, 64>}, {transform_indices = @transform_9, window_bounds = array<i64: 1, 1, 64>}, {transform_indices = @transform_10, window_bounds = array<i64: 1, 64, 32>}, {transform_indices = @transform_11, window_bounds = array<i64: 1, 6, 32>}, {transform_indices = @transform_12, window_bounds = array<i64: 2, 8, 32>}, {transform_indices = @transform_13, window_bounds = array<i64: 2, 1, 8>}]} {
    %c0_i32 = arith.constant 0 : i32
    %0 = arith.cmpi eq, %arg1, %c0_i32 : i32
    %1 = arith.extui %0 : i1 to i32
    %c0_i32_0 = arith.constant 0 : i32
    %2 = arith.cmpi ne, %1, %c0_i32_0 : i32
    scf.if %2 {
      %c0_89 = arith.constant 0 : index
      %c0_90 = arith.constant 0 : index
      %299 = vector.load %arg3[%c0_89, %c0_90] : memref<64x32xbf16, #tpu.memory_space<vmem>>, vector<64x32xbf16>
      %c0_91 = arith.constant 0 : index
      %c0_92 = arith.constant 0 : index
      %300 = vector.load %arg4[%c0_91, %c0_92] : memref<1x32xf32, #tpu.memory_space<vmem>>, vector<1x32xf32>
      %c0_93 = arith.constant 0 : index
      %c0_94 = arith.constant 0 : index
      %301 = vector.load %arg5[%c0_93, %c0_94] : memref<1x32xf32, #tpu.memory_space<vmem>>, vector<1x32xf32>
      %c0_95 = arith.constant 0 : index
      %c0_96 = arith.constant 0 : index
      %302 = vector.load %arg6[%c0_95, %c0_96] : memref<1x32xf32, #tpu.memory_space<vmem>>, vector<1x32xf32>
      %c0_97 = arith.constant 0 : index
      %c0_98 = arith.constant 0 : index
      %c0_99 = arith.constant 0 : index
      %303 = vector.load %arg2[%c0_97, %c0_98, %c0_99] : memref<2x8x64xf32, #tpu.memory_space<vmem>>, vector<1x8x64xf32>
      %304 = vector.shape_cast %303 : vector<1x8x64xf32> to vector<8x64xf32>
      %305 = arith.truncf %304 : vector<8x64xf32> to vector<8x64xbf16>
      %cst_100 = arith.constant dense<0.000000e+00> : vector<8x32xf32>
      %306 = tpu.matmul %305, %299, %cst_100 {dimension_numbers = #tpu.dot_dimension_numbers<[1], [0], [0], [1], [0, 0, 1, 1], [], []>} : vector<8x64xbf16>, vector<64x32xbf16>, vector<8x32xf32> -> vector<8x32xf32>
      %307 = vector.broadcast %300 : vector<1x32xf32> to vector<8x32xf32>
      %308 = arith.addf %306, %307 : vector<8x32xf32>
      %cst_101 = arith.constant 0.000000e+00 : f32
      %309 = vector.broadcast %cst_101 : f32 to vector<8x32xf32>
      %310 = arith.maximumf %308, %309 : vector<8x32xf32>
      %cst_102 = arith.constant dense<0.000000e+00> : vector<8xf32>
      %311 = vector.multi_reduction <add>, %310, %cst_102 [1] : vector<8x32xf32> to vector<8xf32>
      %312 = vector.shape_cast %311 : vector<8xf32> to vector<8x1xf32>
      %cst_103 = arith.constant 3.200000e+01 : f32
      %313 = vector.broadcast %cst_103 : f32 to vector<8x1xf32>
      %314 = arith.divf %312, %313 : vector<8x1xf32>
      %315 = vector.broadcast %314 : vector<8x1xf32> to vector<8x32xf32>
      %316 = arith.subf %310, %315 : vector<8x32xf32>
      %317 = arith.mulf %316, %316 : vector<8x32xf32>
      %cst_104 = arith.constant dense<0.000000e+00> : vector<8xf32>
      %318 = vector.multi_reduction <add>, %317, %cst_104 [1] : vector<8x32xf32> to vector<8xf32>
      %319 = vector.shape_cast %318 : vector<8xf32> to vector<8x1xf32>
      %cst_105 = arith.constant 3.200000e+01 : f32
      %320 = vector.broadcast %cst_105 : f32 to vector<8x1xf32>
      %321 = arith.divf %319, %320 : vector<8x1xf32>
      %322 = vector.broadcast %314 : vector<8x1xf32> to vector<8x32xf32>
      %323 = arith.subf %310, %322 : vector<8x32xf32>
      %cst_106 = arith.constant 9.99999974E-6 : f32
      %324 = vector.broadcast %cst_106 : f32 to vector<8x1xf32>
      %325 = arith.addf %321, %324 : vector<8x1xf32>
      %326 = math.rsqrt %325 : vector<8x1xf32>
      %327 = vector.broadcast %326 : vector<8x1xf32> to vector<8x32xf32>
      %328 = arith.mulf %323, %327 : vector<8x32xf32>
      %329 = vector.broadcast %301 : vector<1x32xf32> to vector<8x32xf32>
      %330 = arith.mulf %328, %329 : vector<8x32xf32>
      %331 = vector.broadcast %302 : vector<1x32xf32> to vector<8x32xf32>
      %332 = arith.addf %330, %331 : vector<8x32xf32>
      %cst_107 = arith.constant dense<0.000000e+00> : vector<8xf32>
      %333 = vector.multi_reduction <add>, %304, %cst_107 [1] : vector<8x64xf32> to vector<8xf32>
      %334 = vector.shape_cast %333 : vector<8xf32> to vector<8x1xf32>
      %cst_108 = arith.constant 0.000000e+00 : f32
      %335 = vector.broadcast %cst_108 : f32 to vector<8x1xf32>
      %336 = arith.cmpf oeq, %334, %335 : vector<8x1xf32>
      %cst_109 = arith.constant 0.000000e+00 : f32
      %337 = vector.shape_cast %336 : vector<8x1xi1> to vector<8x1xi1>
      %338 = vector.broadcast %337 : vector<8x1xi1> to vector<8x32xi1>
      %339 = vector.broadcast %cst_109 : f32 to vector<8x32xf32>
      %340 = arith.select %338, %339, %332 : vector<8x32xi1>, vector<8x32xf32>
      %c0_110 = arith.constant 0 : index
      %c0_111 = arith.constant 0 : index
      %341 = vector.load %arg16[%c0_110, %c0_111] : memref<16x32xf32, #tpu.memory_space<vmem>>, vector<8x32xf32>
      tpu.vector_store %arg16[%c0_110, %c0_111], %340 {strides = array<i32>} : memref<16x32xf32, #tpu.memory_space<vmem>>, vector<8x32xf32>,
      %cst_112 = arith.constant dense<0.000000e+00> : vector<8xf32>
      %342 = vector.multi_reduction <add>, %340, %cst_112 [1] : vector<8x32xf32> to vector<8xf32>
      %343 = vector.shape_cast %342 : vector<8xf32> to vector<8x1xf32>
      %cst_113 = arith.constant 0.000000e+00 : f32
      %344 = vector.broadcast %cst_113 : f32 to vector<8x1xf32>
      %345 = arith.cmpf oeq, %343, %344 : vector<8x1xf32>
      %cst_114 = arith.constant 1.000000e+00 : f32
      %cst_115 = arith.constant 0.000000e+00 : f32
      %346 = vector.broadcast %cst_114 : f32 to vector<8x1xf32>
      %347 = vector.broadcast %cst_115 : f32 to vector<8x1xf32>
      %348 = arith.select %345, %346, %347 : vector<8x1xi1>, vector<8x1xf32>
      %349 = tpu.transpose %348, [1, 0] : vector<8x1xf32> -> vector<1x8xf32>
      %cst_116 = arith.constant -1.000000e+09 : f32
      %350 = vector.broadcast %cst_116 : f32 to vector<1x8xf32>
      %351 = arith.mulf %349, %350 : vector<1x8xf32>
      %c0_117 = arith.constant 0 : index
      %c0_118 = arith.constant 0 : index
      %352 = vector.load %arg18[%c0_117, %c0_118] : memref<2x8xf32, #tpu.memory_space<vmem>>, vector<1x8xf32>
      tpu.vector_store %arg18[%c0_117, %c0_118], %351 {strides = array<i32>} : memref<2x8xf32, #tpu.memory_space<vmem>>, vector<1x8xf32>,
      %c0_119 = arith.constant 0 : index
      %c0_120 = arith.constant 0 : index
      %c0_121 = arith.constant 0 : index
      %353 = vector.load %arg15[%c0_119, %c0_120, %c0_121] : memref<2x1x8xf32, #tpu.memory_space<vmem>>, vector<1x1x8xf32>
      %354 = vector.shape_cast %353 : vector<1x1x8xf32> to vector<1x8xf32>
      %355 = vector.shape_cast %349 : vector<1x8xf32> to vector<1x1x8xf32>
      tpu.vector_store %arg15[%c0_119, %c0_120, %c0_121], %355 {strides = array<i32>} : memref<2x1x8xf32, #tpu.memory_space<vmem>>, vector<1x1x8xf32>,
      %c1_122 = arith.constant 1 : index
      %c0_123 = arith.constant 0 : index
      %c0_124 = arith.constant 0 : index
      %356 = vector.load %arg2[%c1_122, %c0_123, %c0_124] : memref<2x8x64xf32, #tpu.memory_space<vmem>>, vector<1x8x64xf32>
      %357 = vector.shape_cast %356 : vector<1x8x64xf32> to vector<8x64xf32>
      %358 = arith.truncf %357 : vector<8x64xf32> to vector<8x64xbf16>
      %cst_125 = arith.constant dense<0.000000e+00> : vector<8x32xf32>
      %359 = tpu.matmul %358, %299, %cst_125 {dimension_numbers = #tpu.dot_dimension_numbers<[1], [0], [0], [1], [0, 0, 1, 1], [], []>} : vector<8x64xbf16>, vector<64x32xbf16>, vector<8x32xf32> -> vector<8x32xf32>
      %360 = vector.broadcast %300 : vector<1x32xf32> to vector<8x32xf32>
      %361 = arith.addf %359, %360 : vector<8x32xf32>
      %cst_126 = arith.constant 0.000000e+00 : f32
      %362 = vector.broadcast %cst_126 : f32 to vector<8x32xf32>
      %363 = arith.maximumf %361, %362 : vector<8x32xf32>
      %cst_127 = arith.constant dense<0.000000e+00> : vector<8xf32>
      %364 = vector.multi_reduction <add>, %363, %cst_127 [1] : vector<8x32xf32> to vector<8xf32>
      %365 = vector.shape_cast %364 : vector<8xf32> to vector<8x1xf32>
      %cst_128 = arith.constant 3.200000e+01 : f32
      %366 = vector.broadcast %cst_128 : f32 to vector<8x1xf32>
      %367 = arith.divf %365, %366 : vector<8x1xf32>
      %368 = vector.broadcast %367 : vector<8x1xf32> to vector<8x32xf32>
      %369 = arith.subf %363, %368 : vector<8x32xf32>
      %370 = arith.mulf %369, %369 : vector<8x32xf32>
      %cst_129 = arith.constant dense<0.000000e+00> : vector<8xf32>
      %371 = vector.multi_reduction <add>, %370, %cst_129 [1] : vector<8x32xf32> to vector<8xf32>
      %372 = vector.shape_cast %371 : vector<8xf32> to vector<8x1xf32>
      %cst_130 = arith.constant 3.200000e+01 : f32
      %373 = vector.broadcast %cst_130 : f32 to vector<8x1xf32>
      %374 = arith.divf %372, %373 : vector<8x1xf32>
      %375 = vector.broadcast %367 : vector<8x1xf32> to vector<8x32xf32>
      %376 = arith.subf %363, %375 : vector<8x32xf32>
      %cst_131 = arith.constant 9.99999974E-6 : f32
      %377 = vector.broadcast %cst_131 : f32 to vector<8x1xf32>
      %378 = arith.addf %374, %377 : vector<8x1xf32>
      %379 = math.rsqrt %378 : vector<8x1xf32>
      %380 = vector.broadcast %379 : vector<8x1xf32> to vector<8x32xf32>
      %381 = arith.mulf %376, %380 : vector<8x32xf32>
      %382 = vector.broadcast %301 : vector<1x32xf32> to vector<8x32xf32>
      %383 = arith.mulf %381, %382 : vector<8x32xf32>
      %384 = vector.broadcast %302 : vector<1x32xf32> to vector<8x32xf32>
      %385 = arith.addf %383, %384 : vector<8x32xf32>
      %cst_132 = arith.constant dense<0.000000e+00> : vector<8xf32>
      %386 = vector.multi_reduction <add>, %357, %cst_132 [1] : vector<8x64xf32> to vector<8xf32>
      %387 = vector.shape_cast %386 : vector<8xf32> to vector<8x1xf32>
      %cst_133 = arith.constant 0.000000e+00 : f32
      %388 = vector.broadcast %cst_133 : f32 to vector<8x1xf32>
      %389 = arith.cmpf oeq, %387, %388 : vector<8x1xf32>
      %cst_134 = arith.constant 0.000000e+00 : f32
      %390 = vector.shape_cast %389 : vector<8x1xi1> to vector<8x1xi1>
      %391 = vector.broadcast %390 : vector<8x1xi1> to vector<8x32xi1>
      %392 = vector.broadcast %cst_134 : f32 to vector<8x32xf32>
      %393 = arith.select %391, %392, %385 : vector<8x32xi1>, vector<8x32xf32>
      %c8_135 = arith.constant 8 : index
      %c0_136 = arith.constant 0 : index
      %394 = vector.load %arg16[%c8_135, %c0_136] : memref<16x32xf32, #tpu.memory_space<vmem>>, vector<8x32xf32>
      tpu.vector_store %arg16[%c8_135, %c0_136], %393 {strides = array<i32>} : memref<16x32xf32, #tpu.memory_space<vmem>>, vector<8x32xf32>,
      %cst_137 = arith.constant dense<0.000000e+00> : vector<8xf32>
      %395 = vector.multi_reduction <add>, %393, %cst_137 [1] : vector<8x32xf32> to vector<8xf32>
      %396 = vector.shape_cast %395 : vector<8xf32> to vector<8x1xf32>
      %cst_138 = arith.constant 0.000000e+00 : f32
      %397 = vector.broadcast %cst_138 : f32 to vector<8x1xf32>
      %398 = arith.cmpf oeq, %396, %397 : vector<8x1xf32>
      %cst_139 = arith.constant 1.000000e+00 : f32
      %cst_140 = arith.constant 0.000000e+00 : f32
      %399 = vector.broadcast %cst_139 : f32 to vector<8x1xf32>
      %400 = vector.broadcast %cst_140 : f32 to vector<8x1xf32>
      %401 = arith.select %398, %399, %400 : vector<8x1xi1>, vector<8x1xf32>
      %402 = tpu.transpose %401, [1, 0] : vector<8x1xf32> -> vector<1x8xf32>
      %cst_141 = arith.constant -1.000000e+09 : f32
      %403 = vector.broadcast %cst_141 : f32 to vector<1x8xf32>
      %404 = arith.mulf %402, %403 : vector<1x8xf32>
      %c1_142 = arith.constant 1 : index
      %c0_143 = arith.constant 0 : index
      %405 = vector.load %arg18[%c1_142, %c0_143] : memref<2x8xf32, #tpu.memory_space<vmem>>, vector<1x8xf32>
      tpu.vector_store %arg18[%c1_142, %c0_143], %404 {strides = array<i32>} : memref<2x8xf32, #tpu.memory_space<vmem>>, vector<1x8xf32>,
      %c1_144 = arith.constant 1 : index
      %c0_145 = arith.constant 0 : index
      %c0_146 = arith.constant 0 : index
      %406 = vector.load %arg15[%c1_144, %c0_145, %c0_146] : memref<2x1x8xf32, #tpu.memory_space<vmem>>, vector<1x1x8xf32>
      %407 = vector.shape_cast %406 : vector<1x1x8xf32> to vector<1x8xf32>
      %408 = vector.shape_cast %402 : vector<1x8xf32> to vector<1x1x8xf32>
      tpu.vector_store %arg15[%c1_144, %c0_145, %c0_146], %408 {strides = array<i32>} : memref<2x1x8xf32, #tpu.memory_space<vmem>>, vector<1x1x8xf32>,
    } else {
    }
    %c0 = arith.constant 0 : index
    %c0_1 = arith.constant 0 : index
    %3 = vector.load %arg16[%c0, %c0_1] : memref<16x32xf32, #tpu.memory_space<vmem>>, vector<16x32xf32>
    %4 = arith.truncf %3 : vector<16x32xf32> to vector<16x32xbf16>
    %c0_2 = arith.constant 0 : index
    %c0_3 = arith.constant 0 : index
    %c0_4 = arith.constant 0 : index
    %5 = vector.load %arg7[%c0_2, %c0_3, %c0_4] : memref<1x32x96xbf16, #tpu.memory_space<vmem>>, vector<1x32x96xbf16>
    %6 = vector.shape_cast %5 : vector<1x32x96xbf16> to vector<32x96xbf16>
    %cst = arith.constant dense<0.000000e+00> : vector<16x96xf32>
    %7 = tpu.matmul %4, %6, %cst {dimension_numbers = #tpu.dot_dimension_numbers<[1], [0], [0], [1], [0, 0, 1, 1], [], []>} : vector<16x32xbf16>, vector<32x96xbf16>, vector<16x96xf32> -> vector<16x96xf32>
    %c0_5 = arith.constant 0 : index
    %c0_6 = arith.constant 0 : index
    %c0_7 = arith.constant 0 : index
    %8 = vector.load %arg8[%c0_5, %c0_6, %c0_7] : memref<1x1x96xf32, #tpu.memory_space<vmem>>, vector<1x1x96xf32>
    %9 = vector.shape_cast %8 : vector<1x1x96xf32> to vector<1x96xf32>
    %10 = vector.broadcast %9 : vector<1x96xf32> to vector<16x96xf32>
    %11 = arith.addf %7, %10 : vector<16x96xf32>
    %c0_8 = arith.constant 0 : index
    %c0_9 = arith.constant 0 : index
    %c0_10 = arith.constant 0 : index
    %12 = vector.load %arg9[%c0_8, %c0_9, %c0_10] : memref<1x32x32xbf16, #tpu.memory_space<vmem>>, vector<1x32x32xbf16>
    %13 = vector.shape_cast %12 : vector<1x32x32xbf16> to vector<32x32xbf16>
    %14 = vector.extract_strided_slice %11 {offsets = [0, 0], sizes = [8, 96], strides = [1, 1]} : vector<16x96xf32> to vector<8x96xf32>
    %c0_11 = arith.constant 0 : index
    %c0_12 = arith.constant 0 : index
    %15 = vector.load %arg18[%c0_11, %c0_12] : memref<2x8xf32, #tpu.memory_space<vmem>>, vector<1x8xf32>
    %cst_13 = arith.constant 0.000000e+00 : f32
    %16 = vector.broadcast %cst_13 : f32 to vector<8x32xf32>
    %17 = vector.extract_strided_slice %14 {offsets = [0, 0], sizes = [8, 8], strides = [1, 1]} : vector<8x96xf32> to vector<8x8xf32>
    %18 = arith.truncf %17 : vector<8x8xf32> to vector<8x8xbf16>
    %19 = vector.extract_strided_slice %14 {offsets = [0, 32], sizes = [8, 8], strides = [1, 1]} : vector<8x96xf32> to vector<8x8xf32>
    %20 = arith.truncf %19 : vector<8x8xf32> to vector<8x8xbf16>
    %21 = vector.extract_strided_slice %14 {offsets = [0, 64], sizes = [8, 8], strides = [1, 1]} : vector<8x96xf32> to vector<8x8xf32>
    %22 = arith.truncf %21 : vector<8x8xf32> to vector<8x8xbf16>
    %cst_14 = arith.constant dense<0.000000e+00> : vector<8x8xf32>
    %23 = tpu.matmul %18, %20, %cst_14 {dimension_numbers = #tpu.dot_dimension_numbers<[1], [1], [0], [0], [0, 0, 1, 0], [], []>} : vector<8x8xbf16>, vector<8x8xbf16>, vector<8x8xf32> -> vector<8x8xf32>
    %24 = vector.broadcast %15 : vector<1x8xf32> to vector<8x8xf32>
    %25 = arith.addf %23, %24 : vector<8x8xf32>
    %cst_15 = arith.constant dense<0xFF800000> : vector<8xf32>
    %26 = vector.multi_reduction <maximumf>, %25, %cst_15 [1] : vector<8x8xf32> to vector<8xf32>
    %27 = vector.shape_cast %26 : vector<8xf32> to vector<8x1xf32>
    %28 = vector.broadcast %27 : vector<8x1xf32> to vector<8x8xf32>
    %29 = arith.subf %25, %28 : vector<8x8xf32>
    %30 = math.exp %29 : vector<8x8xf32>
    %cst_16 = arith.constant dense<0.000000e+00> : vector<8xf32>
    %31 = vector.multi_reduction <add>, %30, %cst_16 [1] : vector<8x8xf32> to vector<8xf32>
    %32 = vector.shape_cast %31 : vector<8xf32> to vector<8x1xf32>
    %33 = tpu.reciprocal %32 {approx = true} : vector<8x1xf32> -> vector<8x1xf32>
    %34 = vector.broadcast %33 : vector<8x1xf32> to vector<8x8xf32>
    %35 = arith.mulf %30, %34 : vector<8x8xf32>
    %36 = arith.truncf %35 : vector<8x8xf32> to vector<8x8xbf16>
    %cst_17 = arith.constant dense<0.000000e+00> : vector<8x8xf32>
    %37 = tpu.matmul %36, %22, %cst_17 {dimension_numbers = #tpu.dot_dimension_numbers<[1], [0], [0], [1], [0, 0, 1, 1], [], []>} : vector<8x8xbf16>, vector<8x8xbf16>, vector<8x8xf32> -> vector<8x8xf32>
    %38 = arith.truncf %37 : vector<8x8xf32> to vector<8x8xbf16>
    %39 = vector.extract_strided_slice %13 {offsets = [0, 0], sizes = [8, 32], strides = [1, 1]} : vector<32x32xbf16> to vector<8x32xbf16>
    %cst_18 = arith.constant dense<0.000000e+00> : vector<8x32xf32>
    %40 = tpu.matmul %38, %39, %cst_18 {dimension_numbers = #tpu.dot_dimension_numbers<[1], [0], [0], [1], [0, 0, 1, 1], [], []>} : vector<8x8xbf16>, vector<8x32xbf16>, vector<8x32xf32> -> vector<8x32xf32>
    %41 = arith.addf %16, %40 : vector<8x32xf32>
    %42 = vector.extract_strided_slice %14 {offsets = [0, 8], sizes = [8, 8], strides = [1, 1]} : vector<8x96xf32> to vector<8x8xf32>
    %43 = arith.truncf %42 : vector<8x8xf32> to vector<8x8xbf16>
    %44 = vector.extract_strided_slice %14 {offsets = [0, 40], sizes = [8, 8], strides = [1, 1]} : vector<8x96xf32> to vector<8x8xf32>
    %45 = arith.truncf %44 : vector<8x8xf32> to vector<8x8xbf16>
    %46 = vector.extract_strided_slice %14 {offsets = [0, 72], sizes = [8, 8], strides = [1, 1]} : vector<8x96xf32> to vector<8x8xf32>
    %47 = arith.truncf %46 : vector<8x8xf32> to vector<8x8xbf16>
    %cst_19 = arith.constant dense<0.000000e+00> : vector<8x8xf32>
    %48 = tpu.matmul %43, %45, %cst_19 {dimension_numbers = #tpu.dot_dimension_numbers<[1], [1], [0], [0], [0, 0, 1, 0], [], []>} : vector<8x8xbf16>, vector<8x8xbf16>, vector<8x8xf32> -> vector<8x8xf32>
    %49 = vector.broadcast %15 : vector<1x8xf32> to vector<8x8xf32>
    %50 = arith.addf %48, %49 : vector<8x8xf32>
    %cst_20 = arith.constant dense<0xFF800000> : vector<8xf32>
    %51 = vector.multi_reduction <maximumf>, %50, %cst_20 [1] : vector<8x8xf32> to vector<8xf32>
    %52 = vector.shape_cast %51 : vector<8xf32> to vector<8x1xf32>
    %53 = vector.broadcast %52 : vector<8x1xf32> to vector<8x8xf32>
    %54 = arith.subf %50, %53 : vector<8x8xf32>
    %55 = math.exp %54 : vector<8x8xf32>
    %cst_21 = arith.constant dense<0.000000e+00> : vector<8xf32>
    %56 = vector.multi_reduction <add>, %55, %cst_21 [1] : vector<8x8xf32> to vector<8xf32>
    %57 = vector.shape_cast %56 : vector<8xf32> to vector<8x1xf32>
    %58 = tpu.reciprocal %57 {approx = true} : vector<8x1xf32> -> vector<8x1xf32>
    %59 = vector.broadcast %58 : vector<8x1xf32> to vector<8x8xf32>
    %60 = arith.mulf %55, %59 : vector<8x8xf32>
    %61 = arith.truncf %60 : vector<8x8xf32> to vector<8x8xbf16>
    %cst_22 = arith.constant dense<0.000000e+00> : vector<8x8xf32>
    %62 = tpu.matmul %61, %47, %cst_22 {dimension_numbers = #tpu.dot_dimension_numbers<[1], [0], [0], [1], [0, 0, 1, 1], [], []>} : vector<8x8xbf16>, vector<8x8xbf16>, vector<8x8xf32> -> vector<8x8xf32>
    %63 = arith.truncf %62 : vector<8x8xf32> to vector<8x8xbf16>
    %64 = vector.extract_strided_slice %13 {offsets = [8, 0], sizes = [8, 32], strides = [1, 1]} : vector<32x32xbf16> to vector<8x32xbf16>
    %cst_23 = arith.constant dense<0.000000e+00> : vector<8x32xf32>
    %65 = tpu.matmul %63, %64, %cst_23 {dimension_numbers = #tpu.dot_dimension_numbers<[1], [0], [0], [1], [0, 0, 1, 1], [], []>} : vector<8x8xbf16>, vector<8x32xbf16>, vector<8x32xf32> -> vector<8x32xf32>
    %66 = arith.addf %41, %65 : vector<8x32xf32>
    %67 = vector.extract_strided_slice %14 {offsets = [0, 16], sizes = [8, 8], strides = [1, 1]} : vector<8x96xf32> to vector<8x8xf32>
    %68 = arith.truncf %67 : vector<8x8xf32> to vector<8x8xbf16>
    %69 = vector.extract_strided_slice %14 {offsets = [0, 48], sizes = [8, 8], strides = [1, 1]} : vector<8x96xf32> to vector<8x8xf32>
    %70 = arith.truncf %69 : vector<8x8xf32> to vector<8x8xbf16>
    %71 = vector.extract_strided_slice %14 {offsets = [0, 80], sizes = [8, 8], strides = [1, 1]} : vector<8x96xf32> to vector<8x8xf32>
    %72 = arith.truncf %71 : vector<8x8xf32> to vector<8x8xbf16>
    %cst_24 = arith.constant dense<0.000000e+00> : vector<8x8xf32>
    %73 = tpu.matmul %68, %70, %cst_24 {dimension_numbers = #tpu.dot_dimension_numbers<[1], [1], [0], [0], [0, 0, 1, 0], [], []>} : vector<8x8xbf16>, vector<8x8xbf16>, vector<8x8xf32> -> vector<8x8xf32>
    %74 = vector.broadcast %15 : vector<1x8xf32> to vector<8x8xf32>
    %75 = arith.addf %73, %74 : vector<8x8xf32>
    %cst_25 = arith.constant dense<0xFF800000> : vector<8xf32>
    %76 = vector.multi_reduction <maximumf>, %75, %cst_25 [1] : vector<8x8xf32> to vector<8xf32>
    %77 = vector.shape_cast %76 : vector<8xf32> to vector<8x1xf32>
    %78 = vector.broadcast %77 : vector<8x1xf32> to vector<8x8xf32>
    %79 = arith.subf %75, %78 : vector<8x8xf32>
    %80 = math.exp %79 : vector<8x8xf32>
    %cst_26 = arith.constant dense<0.000000e+00> : vector<8xf32>
    %81 = vector.multi_reduction <add>, %80, %cst_26 [1] : vector<8x8xf32> to vector<8xf32>
    %82 = vector.shape_cast %81 : vector<8xf32> to vector<8x1xf32>
    %83 = tpu.reciprocal %82 {approx = true} : vector<8x1xf32> -> vector<8x1xf32>
    %84 = vector.broadcast %83 : vector<8x1xf32> to vector<8x8xf32>
    %85 = arith.mulf %80, %84 : vector<8x8xf32>
    %86 = arith.truncf %85 : vector<8x8xf32> to vector<8x8xbf16>
    %cst_27 = arith.constant dense<0.000000e+00> : vector<8x8xf32>
    %87 = tpu.matmul %86, %72, %cst_27 {dimension_numbers = #tpu.dot_dimension_numbers<[1], [0], [0], [1], [0, 0, 1, 1], [], []>} : vector<8x8xbf16>, vector<8x8xbf16>, vector<8x8xf32> -> vector<8x8xf32>
    %88 = arith.truncf %87 : vector<8x8xf32> to vector<8x8xbf16>
    %89 = vector.extract_strided_slice %13 {offsets = [16, 0], sizes = [8, 32], strides = [1, 1]} : vector<32x32xbf16> to vector<8x32xbf16>
    %cst_28 = arith.constant dense<0.000000e+00> : vector<8x32xf32>
    %90 = tpu.matmul %88, %89, %cst_28 {dimension_numbers = #tpu.dot_dimension_numbers<[1], [0], [0], [1], [0, 0, 1, 1], [], []>} : vector<8x8xbf16>, vector<8x32xbf16>, vector<8x32xf32> -> vector<8x32xf32>
    %91 = arith.addf %66, %90 : vector<8x32xf32>
    %92 = vector.extract_strided_slice %14 {offsets = [0, 24], sizes = [8, 8], strides = [1, 1]} : vector<8x96xf32> to vector<8x8xf32>
    %93 = arith.truncf %92 : vector<8x8xf32> to vector<8x8xbf16>
    %94 = vector.extract_strided_slice %14 {offsets = [0, 56], sizes = [8, 8], strides = [1, 1]} : vector<8x96xf32> to vector<8x8xf32>
    %95 = arith.truncf %94 : vector<8x8xf32> to vector<8x8xbf16>
    %96 = vector.extract_strided_slice %14 {offsets = [0, 88], sizes = [8, 8], strides = [1, 1]} : vector<8x96xf32> to vector<8x8xf32>
    %97 = arith.truncf %96 : vector<8x8xf32> to vector<8x8xbf16>
    %cst_29 = arith.constant dense<0.000000e+00> : vector<8x8xf32>
    %98 = tpu.matmul %93, %95, %cst_29 {dimension_numbers = #tpu.dot_dimension_numbers<[1], [1], [0], [0], [0, 0, 1, 0], [], []>} : vector<8x8xbf16>, vector<8x8xbf16>, vector<8x8xf32> -> vector<8x8xf32>
    %99 = vector.broadcast %15 : vector<1x8xf32> to vector<8x8xf32>
    %100 = arith.addf %98, %99 : vector<8x8xf32>
    %cst_30 = arith.constant dense<0xFF800000> : vector<8xf32>
    %101 = vector.multi_reduction <maximumf>, %100, %cst_30 [1] : vector<8x8xf32> to vector<8xf32>
    %102 = vector.shape_cast %101 : vector<8xf32> to vector<8x1xf32>
    %103 = vector.broadcast %102 : vector<8x1xf32> to vector<8x8xf32>
    %104 = arith.subf %100, %103 : vector<8x8xf32>
    %105 = math.exp %104 : vector<8x8xf32>
    %cst_31 = arith.constant dense<0.000000e+00> : vector<8xf32>
    %106 = vector.multi_reduction <add>, %105, %cst_31 [1] : vector<8x8xf32> to vector<8xf32>
    %107 = vector.shape_cast %106 : vector<8xf32> to vector<8x1xf32>
    %108 = tpu.reciprocal %107 {approx = true} : vector<8x1xf32> -> vector<8x1xf32>
    %109 = vector.broadcast %108 : vector<8x1xf32> to vector<8x8xf32>
    %110 = arith.mulf %105, %109 : vector<8x8xf32>
    %111 = arith.truncf %110 : vector<8x8xf32> to vector<8x8xbf16>
    %cst_32 = arith.constant dense<0.000000e+00> : vector<8x8xf32>
    %112 = tpu.matmul %111, %97, %cst_32 {dimension_numbers = #tpu.dot_dimension_numbers<[1], [0], [0], [1], [0, 0, 1, 1], [], []>} : vector<8x8xbf16>, vector<8x8xbf16>, vector<8x8xf32> -> vector<8x8xf32>
    %113 = arith.truncf %112 : vector<8x8xf32> to vector<8x8xbf16>
    %114 = vector.extract_strided_slice %13 {offsets = [24, 0], sizes = [8, 32], strides = [1, 1]} : vector<32x32xbf16> to vector<8x32xbf16>
    %cst_33 = arith.constant dense<0.000000e+00> : vector<8x32xf32>
    %115 = tpu.matmul %113, %114, %cst_33 {dimension_numbers = #tpu.dot_dimension_numbers<[1], [0], [0], [1], [0, 0, 1, 1], [], []>} : vector<8x8xbf16>, vector<8x32xbf16>, vector<8x32xf32> -> vector<8x32xf32>
    %116 = arith.addf %91, %115 : vector<8x32xf32>
    %c0_34 = arith.constant 0 : index
    %c0_35 = arith.constant 0 : index
    %117 = vector.load %arg17[%c0_34, %c0_35] : memref<16x32xf32, #tpu.memory_space<vmem>>, vector<8x32xf32>
    tpu.vector_store %arg17[%c0_34, %c0_35], %116 {strides = array<i32>} : memref<16x32xf32, #tpu.memory_space<vmem>>, vector<8x32xf32>,
    %118 = vector.extract_strided_slice %11 {offsets = [8, 0], sizes = [8, 96], strides = [1, 1]} : vector<16x96xf32> to vector<8x96xf32>
    %c1 = arith.constant 1 : index
    %c0_36 = arith.constant 0 : index
    %119 = vector.load %arg18[%c1, %c0_36] : memref<2x8xf32, #tpu.memory_space<vmem>>, vector<1x8xf32>
    %cst_37 = arith.constant 0.000000e+00 : f32
    %120 = vector.broadcast %cst_37 : f32 to vector<8x32xf32>
    %121 = vector.extract_strided_slice %118 {offsets = [0, 0], sizes = [8, 8], strides = [1, 1]} : vector<8x96xf32> to vector<8x8xf32>
    %122 = arith.truncf %121 : vector<8x8xf32> to vector<8x8xbf16>
    %123 = vector.extract_strided_slice %118 {offsets = [0, 32], sizes = [8, 8], strides = [1, 1]} : vector<8x96xf32> to vector<8x8xf32>
    %124 = arith.truncf %123 : vector<8x8xf32> to vector<8x8xbf16>
    %125 = vector.extract_strided_slice %118 {offsets = [0, 64], sizes = [8, 8], strides = [1, 1]} : vector<8x96xf32> to vector<8x8xf32>
    %126 = arith.truncf %125 : vector<8x8xf32> to vector<8x8xbf16>
    %cst_38 = arith.constant dense<0.000000e+00> : vector<8x8xf32>
    %127 = tpu.matmul %122, %124, %cst_38 {dimension_numbers = #tpu.dot_dimension_numbers<[1], [1], [0], [0], [0, 0, 1, 0], [], []>} : vector<8x8xbf16>, vector<8x8xbf16>, vector<8x8xf32> -> vector<8x8xf32>
    %128 = vector.broadcast %119 : vector<1x8xf32> to vector<8x8xf32>
    %129 = arith.addf %127, %128 : vector<8x8xf32>
    %cst_39 = arith.constant dense<0xFF800000> : vector<8xf32>
    %130 = vector.multi_reduction <maximumf>, %129, %cst_39 [1] : vector<8x8xf32> to vector<8xf32>
    %131 = vector.shape_cast %130 : vector<8xf32> to vector<8x1xf32>
    %132 = vector.broadcast %131 : vector<8x1xf32> to vector<8x8xf32>
    %133 = arith.subf %129, %132 : vector<8x8xf32>
    %134 = math.exp %133 : vector<8x8xf32>
    %cst_40 = arith.constant dense<0.000000e+00> : vector<8xf32>
    %135 = vector.multi_reduction <add>, %134, %cst_40 [1] : vector<8x8xf32> to vector<8xf32>
    %136 = vector.shape_cast %135 : vector<8xf32> to vector<8x1xf32>
    %137 = tpu.reciprocal %136 {approx = true} : vector<8x1xf32> -> vector<8x1xf32>
    %138 = vector.broadcast %137 : vector<8x1xf32> to vector<8x8xf32>
    %139 = arith.mulf %134, %138 : vector<8x8xf32>
    %140 = arith.truncf %139 : vector<8x8xf32> to vector<8x8xbf16>
    %cst_41 = arith.constant dense<0.000000e+00> : vector<8x8xf32>
    %141 = tpu.matmul %140, %126, %cst_41 {dimension_numbers = #tpu.dot_dimension_numbers<[1], [0], [0], [1], [0, 0, 1, 1], [], []>} : vector<8x8xbf16>, vector<8x8xbf16>, vector<8x8xf32> -> vector<8x8xf32>
    %142 = arith.truncf %141 : vector<8x8xf32> to vector<8x8xbf16>
    %143 = vector.extract_strided_slice %13 {offsets = [0, 0], sizes = [8, 32], strides = [1, 1]} : vector<32x32xbf16> to vector<8x32xbf16>
    %cst_42 = arith.constant dense<0.000000e+00> : vector<8x32xf32>
    %144 = tpu.matmul %142, %143, %cst_42 {dimension_numbers = #tpu.dot_dimension_numbers<[1], [0], [0], [1], [0, 0, 1, 1], [], []>} : vector<8x8xbf16>, vector<8x32xbf16>, vector<8x32xf32> -> vector<8x32xf32>
    %145 = arith.addf %120, %144 : vector<8x32xf32>
    %146 = vector.extract_strided_slice %118 {offsets = [0, 8], sizes = [8, 8], strides = [1, 1]} : vector<8x96xf32> to vector<8x8xf32>
    %147 = arith.truncf %146 : vector<8x8xf32> to vector<8x8xbf16>
    %148 = vector.extract_strided_slice %118 {offsets = [0, 40], sizes = [8, 8], strides = [1, 1]} : vector<8x96xf32> to vector<8x8xf32>
    %149 = arith.truncf %148 : vector<8x8xf32> to vector<8x8xbf16>
    %150 = vector.extract_strided_slice %118 {offsets = [0, 72], sizes = [8, 8], strides = [1, 1]} : vector<8x96xf32> to vector<8x8xf32>
    %151 = arith.truncf %150 : vector<8x8xf32> to vector<8x8xbf16>
    %cst_43 = arith.constant dense<0.000000e+00> : vector<8x8xf32>
    %152 = tpu.matmul %147, %149, %cst_43 {dimension_numbers = #tpu.dot_dimension_numbers<[1], [1], [0], [0], [0, 0, 1, 0], [], []>} : vector<8x8xbf16>, vector<8x8xbf16>, vector<8x8xf32> -> vector<8x8xf32>
    %153 = vector.broadcast %119 : vector<1x8xf32> to vector<8x8xf32>
    %154 = arith.addf %152, %153 : vector<8x8xf32>
    %cst_44 = arith.constant dense<0xFF800000> : vector<8xf32>
    %155 = vector.multi_reduction <maximumf>, %154, %cst_44 [1] : vector<8x8xf32> to vector<8xf32>
    %156 = vector.shape_cast %155 : vector<8xf32> to vector<8x1xf32>
    %157 = vector.broadcast %156 : vector<8x1xf32> to vector<8x8xf32>
    %158 = arith.subf %154, %157 : vector<8x8xf32>
    %159 = math.exp %158 : vector<8x8xf32>
    %cst_45 = arith.constant dense<0.000000e+00> : vector<8xf32>
    %160 = vector.multi_reduction <add>, %159, %cst_45 [1] : vector<8x8xf32> to vector<8xf32>
    %161 = vector.shape_cast %160 : vector<8xf32> to vector<8x1xf32>
    %162 = tpu.reciprocal %161 {approx = true} : vector<8x1xf32> -> vector<8x1xf32>
    %163 = vector.broadcast %162 : vector<8x1xf32> to vector<8x8xf32>
    %164 = arith.mulf %159, %163 : vector<8x8xf32>
    %165 = arith.truncf %164 : vector<8x8xf32> to vector<8x8xbf16>
    %cst_46 = arith.constant dense<0.000000e+00> : vector<8x8xf32>
    %166 = tpu.matmul %165, %151, %cst_46 {dimension_numbers = #tpu.dot_dimension_numbers<[1], [0], [0], [1], [0, 0, 1, 1], [], []>} : vector<8x8xbf16>, vector<8x8xbf16>, vector<8x8xf32> -> vector<8x8xf32>
    %167 = arith.truncf %166 : vector<8x8xf32> to vector<8x8xbf16>
    %168 = vector.extract_strided_slice %13 {offsets = [8, 0], sizes = [8, 32], strides = [1, 1]} : vector<32x32xbf16> to vector<8x32xbf16>
    %cst_47 = arith.constant dense<0.000000e+00> : vector<8x32xf32>
    %169 = tpu.matmul %167, %168, %cst_47 {dimension_numbers = #tpu.dot_dimension_numbers<[1], [0], [0], [1], [0, 0, 1, 1], [], []>} : vector<8x8xbf16>, vector<8x32xbf16>, vector<8x32xf32> -> vector<8x32xf32>
    %170 = arith.addf %145, %169 : vector<8x32xf32>
    %171 = vector.extract_strided_slice %118 {offsets = [0, 16], sizes = [8, 8], strides = [1, 1]} : vector<8x96xf32> to vector<8x8xf32>
    %172 = arith.truncf %171 : vector<8x8xf32> to vector<8x8xbf16>
    %173 = vector.extract_strided_slice %118 {offsets = [0, 48], sizes = [8, 8], strides = [1, 1]} : vector<8x96xf32> to vector<8x8xf32>
    %174 = arith.truncf %173 : vector<8x8xf32> to vector<8x8xbf16>
    %175 = vector.extract_strided_slice %118 {offsets = [0, 80], sizes = [8, 8], strides = [1, 1]} : vector<8x96xf32> to vector<8x8xf32>
    %176 = arith.truncf %175 : vector<8x8xf32> to vector<8x8xbf16>
    %cst_48 = arith.constant dense<0.000000e+00> : vector<8x8xf32>
    %177 = tpu.matmul %172, %174, %cst_48 {dimension_numbers = #tpu.dot_dimension_numbers<[1], [1], [0], [0], [0, 0, 1, 0], [], []>} : vector<8x8xbf16>, vector<8x8xbf16>, vector<8x8xf32> -> vector<8x8xf32>
    %178 = vector.broadcast %119 : vector<1x8xf32> to vector<8x8xf32>
    %179 = arith.addf %177, %178 : vector<8x8xf32>
    %cst_49 = arith.constant dense<0xFF800000> : vector<8xf32>
    %180 = vector.multi_reduction <maximumf>, %179, %cst_49 [1] : vector<8x8xf32> to vector<8xf32>
    %181 = vector.shape_cast %180 : vector<8xf32> to vector<8x1xf32>
    %182 = vector.broadcast %181 : vector<8x1xf32> to vector<8x8xf32>
    %183 = arith.subf %179, %182 : vector<8x8xf32>
    %184 = math.exp %183 : vector<8x8xf32>
    %cst_50 = arith.constant dense<0.000000e+00> : vector<8xf32>
    %185 = vector.multi_reduction <add>, %184, %cst_50 [1] : vector<8x8xf32> to vector<8xf32>
    %186 = vector.shape_cast %185 : vector<8xf32> to vector<8x1xf32>
    %187 = tpu.reciprocal %186 {approx = true} : vector<8x1xf32> -> vector<8x1xf32>
    %188 = vector.broadcast %187 : vector<8x1xf32> to vector<8x8xf32>
    %189 = arith.mulf %184, %188 : vector<8x8xf32>
    %190 = arith.truncf %189 : vector<8x8xf32> to vector<8x8xbf16>
    %cst_51 = arith.constant dense<0.000000e+00> : vector<8x8xf32>
    %191 = tpu.matmul %190, %176, %cst_51 {dimension_numbers = #tpu.dot_dimension_numbers<[1], [0], [0], [1], [0, 0, 1, 1], [], []>} : vector<8x8xbf16>, vector<8x8xbf16>, vector<8x8xf32> -> vector<8x8xf32>
    %192 = arith.truncf %191 : vector<8x8xf32> to vector<8x8xbf16>
    %193 = vector.extract_strided_slice %13 {offsets = [16, 0], sizes = [8, 32], strides = [1, 1]} : vector<32x32xbf16> to vector<8x32xbf16>
    %cst_52 = arith.constant dense<0.000000e+00> : vector<8x32xf32>
    %194 = tpu.matmul %192, %193, %cst_52 {dimension_numbers = #tpu.dot_dimension_numbers<[1], [0], [0], [1], [0, 0, 1, 1], [], []>} : vector<8x8xbf16>, vector<8x32xbf16>, vector<8x32xf32> -> vector<8x32xf32>
    %195 = arith.addf %170, %194 : vector<8x32xf32>
    %196 = vector.extract_strided_slice %118 {offsets = [0, 24], sizes = [8, 8], strides = [1, 1]} : vector<8x96xf32> to vector<8x8xf32>
    %197 = arith.truncf %196 : vector<8x8xf32> to vector<8x8xbf16>
    %198 = vector.extract_strided_slice %118 {offsets = [0, 56], sizes = [8, 8], strides = [1, 1]} : vector<8x96xf32> to vector<8x8xf32>
    %199 = arith.truncf %198 : vector<8x8xf32> to vector<8x8xbf16>
    %200 = vector.extract_strided_slice %118 {offsets = [0, 88], sizes = [8, 8], strides = [1, 1]} : vector<8x96xf32> to vector<8x8xf32>
    %201 = arith.truncf %200 : vector<8x8xf32> to vector<8x8xbf16>
    %cst_53 = arith.constant dense<0.000000e+00> : vector<8x8xf32>
    %202 = tpu.matmul %197, %199, %cst_53 {dimension_numbers = #tpu.dot_dimension_numbers<[1], [1], [0], [0], [0, 0, 1, 0], [], []>} : vector<8x8xbf16>, vector<8x8xbf16>, vector<8x8xf32> -> vector<8x8xf32>
    %203 = vector.broadcast %119 : vector<1x8xf32> to vector<8x8xf32>
    %204 = arith.addf %202, %203 : vector<8x8xf32>
    %cst_54 = arith.constant dense<0xFF800000> : vector<8xf32>
    %205 = vector.multi_reduction <maximumf>, %204, %cst_54 [1] : vector<8x8xf32> to vector<8xf32>
    %206 = vector.shape_cast %205 : vector<8xf32> to vector<8x1xf32>
    %207 = vector.broadcast %206 : vector<8x1xf32> to vector<8x8xf32>
    %208 = arith.subf %204, %207 : vector<8x8xf32>
    %209 = math.exp %208 : vector<8x8xf32>
    %cst_55 = arith.constant dense<0.000000e+00> : vector<8xf32>
    %210 = vector.multi_reduction <add>, %209, %cst_55 [1] : vector<8x8xf32> to vector<8xf32>
    %211 = vector.shape_cast %210 : vector<8xf32> to vector<8x1xf32>
    %212 = tpu.reciprocal %211 {approx = true} : vector<8x1xf32> -> vector<8x1xf32>
    %213 = vector.broadcast %212 : vector<8x1xf32> to vector<8x8xf32>
    %214 = arith.mulf %209, %213 : vector<8x8xf32>
    %215 = arith.truncf %214 : vector<8x8xf32> to vector<8x8xbf16>
    %cst_56 = arith.constant dense<0.000000e+00> : vector<8x8xf32>
    %216 = tpu.matmul %215, %201, %cst_56 {dimension_numbers = #tpu.dot_dimension_numbers<[1], [0], [0], [1], [0, 0, 1, 1], [], []>} : vector<8x8xbf16>, vector<8x8xbf16>, vector<8x8xf32> -> vector<8x8xf32>
    %217 = arith.truncf %216 : vector<8x8xf32> to vector<8x8xbf16>
    %218 = vector.extract_strided_slice %13 {offsets = [24, 0], sizes = [8, 32], strides = [1, 1]} : vector<32x32xbf16> to vector<8x32xbf16>
    %cst_57 = arith.constant dense<0.000000e+00> : vector<8x32xf32>
    %219 = tpu.matmul %217, %218, %cst_57 {dimension_numbers = #tpu.dot_dimension_numbers<[1], [0], [0], [1], [0, 0, 1, 1], [], []>} : vector<8x8xbf16>, vector<8x32xbf16>, vector<8x32xf32> -> vector<8x32xf32>
    %220 = arith.addf %195, %219 : vector<8x32xf32>
    %c8 = arith.constant 8 : index
    %c0_58 = arith.constant 0 : index
    %221 = vector.load %arg17[%c8, %c0_58] : memref<16x32xf32, #tpu.memory_space<vmem>>, vector<8x32xf32>
    tpu.vector_store %arg17[%c8, %c0_58], %220 {strides = array<i32>} : memref<16x32xf32, #tpu.memory_space<vmem>>, vector<8x32xf32>,
    %c0_59 = arith.constant 0 : index
    %c0_60 = arith.constant 0 : index
    %c0_61 = arith.constant 0 : index
    %222 = vector.load %arg13[%c0_59, %c0_60, %c0_61] : memref<1x6x32xf32, #tpu.memory_space<vmem>>, vector<1x6x32xf32>
    %223 = vector.shape_cast %222 : vector<1x6x32xf32> to vector<6x32xf32>
    %224 = vector.extract_strided_slice %223 {offsets = [0, 0], sizes = [1, 32], strides = [1, 1]} : vector<6x32xf32> to vector<1x32xf32>
    %225 = vector.extract_strided_slice %223 {offsets = [1, 0], sizes = [1, 32], strides = [1, 1]} : vector<6x32xf32> to vector<1x32xf32>
    %226 = vector.extract_strided_slice %223 {offsets = [2, 0], sizes = [1, 32], strides = [1, 1]} : vector<6x32xf32> to vector<1x32xf32>
    %227 = vector.extract_strided_slice %223 {offsets = [3, 0], sizes = [1, 32], strides = [1, 1]} : vector<6x32xf32> to vector<1x32xf32>
    %228 = vector.extract_strided_slice %223 {offsets = [4, 0], sizes = [1, 32], strides = [1, 1]} : vector<6x32xf32> to vector<1x32xf32>
    %229 = vector.extract_strided_slice %223 {offsets = [5, 0], sizes = [1, 32], strides = [1, 1]} : vector<6x32xf32> to vector<1x32xf32>
    %c0_62 = arith.constant 0 : index
    %c0_63 = arith.constant 0 : index
    %230 = vector.load %arg17[%c0_62, %c0_63] : memref<16x32xf32, #tpu.memory_space<vmem>>, vector<16x32xf32>
    %231 = arith.addf %3, %230 : vector<16x32xf32>
    %232 = vector.broadcast %224 : vector<1x32xf32> to vector<16x32xf32>
    %233 = arith.addf %231, %232 : vector<16x32xf32>
    %cst_64 = arith.constant dense<0.000000e+00> : vector<16xf32>
    %234 = vector.multi_reduction <add>, %233, %cst_64 [1] : vector<16x32xf32> to vector<16xf32>
    %235 = vector.shape_cast %234 : vector<16xf32> to vector<16x1xf32>
    %cst_65 = arith.constant 3.200000e+01 : f32
    %236 = vector.broadcast %cst_65 : f32 to vector<16x1xf32>
    %237 = arith.divf %235, %236 : vector<16x1xf32>
    %238 = vector.broadcast %237 : vector<16x1xf32> to vector<16x32xf32>
    %239 = arith.subf %233, %238 : vector<16x32xf32>
    %240 = arith.mulf %239, %239 : vector<16x32xf32>
    %cst_66 = arith.constant dense<0.000000e+00> : vector<16xf32>
    %241 = vector.multi_reduction <add>, %240, %cst_66 [1] : vector<16x32xf32> to vector<16xf32>
    %242 = vector.shape_cast %241 : vector<16xf32> to vector<16x1xf32>
    %cst_67 = arith.constant 3.200000e+01 : f32
    %243 = vector.broadcast %cst_67 : f32 to vector<16x1xf32>
    %244 = arith.divf %242, %243 : vector<16x1xf32>
    %245 = vector.broadcast %237 : vector<16x1xf32> to vector<16x32xf32>
    %246 = arith.subf %233, %245 : vector<16x32xf32>
    %cst_68 = arith.constant 9.99999974E-6 : f32
    %247 = vector.broadcast %cst_68 : f32 to vector<16x1xf32>
    %248 = arith.addf %244, %247 : vector<16x1xf32>
    %249 = math.rsqrt %248 : vector<16x1xf32>
    %250 = vector.broadcast %249 : vector<16x1xf32> to vector<16x32xf32>
    %251 = arith.mulf %246, %250 : vector<16x32xf32>
    %252 = vector.broadcast %225 : vector<1x32xf32> to vector<16x32xf32>
    %253 = arith.mulf %251, %252 : vector<16x32xf32>
    %254 = vector.broadcast %226 : vector<1x32xf32> to vector<16x32xf32>
    %255 = arith.addf %253, %254 : vector<16x32xf32>
    %256 = arith.truncf %255 : vector<16x32xf32> to vector<16x32xbf16>
    %c0_69 = arith.constant 0 : index
    %c0_70 = arith.constant 0 : index
    %c0_71 = arith.constant 0 : index
    %257 = vector.load %arg10[%c0_69, %c0_70, %c0_71] : memref<1x32x64xbf16, #tpu.memory_space<vmem>>, vector<1x32x64xbf16>
    %258 = vector.shape_cast %257 : vector<1x32x64xbf16> to vector<32x64xbf16>
    %cst_72 = arith.constant dense<0.000000e+00> : vector<16x64xf32>
    %259 = tpu.matmul %256, %258, %cst_72 {dimension_numbers = #tpu.dot_dimension_numbers<[1], [0], [0], [1], [0, 0, 1, 1], [], []>} : vector<16x32xbf16>, vector<32x64xbf16>, vector<16x64xf32> -> vector<16x64xf32>
    %c0_73 = arith.constant 0 : index
    %c0_74 = arith.constant 0 : index
    %c0_75 = arith.constant 0 : index
    %260 = vector.load %arg11[%c0_73, %c0_74, %c0_75] : memref<1x1x64xf32, #tpu.memory_space<vmem>>, vector<1x1x64xf32>
    %261 = vector.shape_cast %260 : vector<1x1x64xf32> to vector<1x64xf32>
    %262 = vector.broadcast %261 : vector<1x64xf32> to vector<16x64xf32>
    %263 = arith.addf %259, %262 : vector<16x64xf32>
    %cst_76 = arith.constant 0.000000e+00 : f32
    %264 = vector.broadcast %cst_76 : f32 to vector<16x64xf32>
    %265 = arith.maximumf %263, %264 : vector<16x64xf32>
    %266 = arith.truncf %265 : vector<16x64xf32> to vector<16x64xbf16>
    %c0_77 = arith.constant 0 : index
    %c0_78 = arith.constant 0 : index
    %c0_79 = arith.constant 0 : index
    %267 = vector.load %arg12[%c0_77, %c0_78, %c0_79] : memref<1x64x32xbf16, #tpu.memory_space<vmem>>, vector<1x64x32xbf16>
    %268 = vector.shape_cast %267 : vector<1x64x32xbf16> to vector<64x32xbf16>
    %cst_80 = arith.constant dense<0.000000e+00> : vector<16x32xf32>
    %269 = tpu.matmul %266, %268, %cst_80 {dimension_numbers = #tpu.dot_dimension_numbers<[1], [0], [0], [1], [0, 0, 1, 1], [], []>} : vector<16x64xbf16>, vector<64x32xbf16>, vector<16x32xf32> -> vector<16x32xf32>
    %270 = vector.broadcast %227 : vector<1x32xf32> to vector<16x32xf32>
    %271 = arith.addf %269, %270 : vector<16x32xf32>
    %272 = arith.addf %255, %271 : vector<16x32xf32>
    %cst_81 = arith.constant dense<0.000000e+00> : vector<16xf32>
    %273 = vector.multi_reduction <add>, %272, %cst_81 [1] : vector<16x32xf32> to vector<16xf32>
    %274 = vector.shape_cast %273 : vector<16xf32> to vector<16x1xf32>
    %cst_82 = arith.constant 3.200000e+01 : f32
    %275 = vector.broadcast %cst_82 : f32 to vector<16x1xf32>
    %276 = arith.divf %274, %275 : vector<16x1xf32>
    %277 = vector.broadcast %276 : vector<16x1xf32> to vector<16x32xf32>
    %278 = arith.subf %272, %277 : vector<16x32xf32>
    %279 = arith.mulf %278, %278 : vector<16x32xf32>
    %cst_83 = arith.constant dense<0.000000e+00> : vector<16xf32>
    %280 = vector.multi_reduction <add>, %279, %cst_83 [1] : vector<16x32xf32> to vector<16xf32>
    %281 = vector.shape_cast %280 : vector<16xf32> to vector<16x1xf32>
    %cst_84 = arith.constant 3.200000e+01 : f32
    %282 = vector.broadcast %cst_84 : f32 to vector<16x1xf32>
    %283 = arith.divf %281, %282 : vector<16x1xf32>
    %284 = vector.broadcast %276 : vector<16x1xf32> to vector<16x32xf32>
    %285 = arith.subf %272, %284 : vector<16x32xf32>
    %cst_85 = arith.constant 9.99999974E-6 : f32
    %286 = vector.broadcast %cst_85 : f32 to vector<16x1xf32>
    %287 = arith.addf %283, %286 : vector<16x1xf32>
    %288 = math.rsqrt %287 : vector<16x1xf32>
    %289 = vector.broadcast %288 : vector<16x1xf32> to vector<16x32xf32>
    %290 = arith.mulf %285, %289 : vector<16x32xf32>
    %291 = vector.broadcast %228 : vector<1x32xf32> to vector<16x32xf32>
    %292 = arith.mulf %290, %291 : vector<16x32xf32>
    %293 = vector.broadcast %229 : vector<1x32xf32> to vector<16x32xf32>
    %294 = arith.addf %292, %293 : vector<16x32xf32>
    %c0_86 = arith.constant 0 : index
    %c0_87 = arith.constant 0 : index
    %295 = vector.load %arg16[%c0_86, %c0_87] : memref<16x32xf32, #tpu.memory_space<vmem>>, vector<16x32xf32>
    tpu.vector_store %arg16[%c0_86, %c0_87], %294 {strides = array<i32>} : memref<16x32xf32, #tpu.memory_space<vmem>>, vector<16x32xf32>,
    %c1_i32 = arith.constant 1 : i32
    %296 = arith.cmpi eq, %arg1, %c1_i32 : i32
    %297 = arith.extui %296 : i1 to i32
    %c0_i32_88 = arith.constant 0 : i32
    %298 = arith.cmpi ne, %297, %c0_i32_88 : i32
    scf.if %298 {
      %c0_89 = arith.constant 0 : index
      %c0_90 = arith.constant 0 : index
      %299 = vector.load %arg16[%c0_89, %c0_90] : memref<16x32xf32, #tpu.memory_space<vmem>>, vector<8x32xf32>
      %c0_91 = arith.constant 0 : index
      %c0_92 = arith.constant 0 : index
      %c0_93 = arith.constant 0 : index
      %300 = vector.load %arg14[%c0_91, %c0_92, %c0_93] : memref<2x8x32xf32, #tpu.memory_space<vmem>>, vector<1x8x32xf32>
      %301 = vector.shape_cast %300 : vector<1x8x32xf32> to vector<8x32xf32>
      %302 = vector.shape_cast %299 : vector<8x32xf32> to vector<1x8x32xf32>
      tpu.vector_store %arg14[%c0_91, %c0_92, %c0_93], %302 {strides = array<i32>} : memref<2x8x32xf32, #tpu.memory_space<vmem>>, vector<1x8x32xf32>,
      %c8_94 = arith.constant 8 : index
      %c0_95 = arith.constant 0 : index
      %303 = vector.load %arg16[%c8_94, %c0_95] : memref<16x32xf32, #tpu.memory_space<vmem>>, vector<8x32xf32>
      %c1_96 = arith.constant 1 : index
      %c0_97 = arith.constant 0 : index
      %c0_98 = arith.constant 0 : index
      %304 = vector.load %arg14[%c1_96, %c0_97, %c0_98] : memref<2x8x32xf32, #tpu.memory_space<vmem>>, vector<1x8x32xf32>
      %305 = vector.shape_cast %304 : vector<1x8x32xf32> to vector<8x32xf32>
      %306 = vector.shape_cast %303 : vector<8x32xf32> to vector<1x8x32xf32>
      tpu.vector_store %arg14[%c1_96, %c0_97, %c0_98], %306 {strides = array<i32>} : memref<2x8x32xf32, #tpu.memory_space<vmem>>, vector<1x8x32xf32>,
    } else {
    }
    return
  }
  func.func @transform_0(%arg0: i32, %arg1: i32) -> (i32, i32, i32) {
    %c0_i32 = arith.constant 0 : i32
    %c0_i32_0 = arith.constant 0 : i32
    %c0_i32_1 = arith.constant 0 : i32
    return %arg0, %c0_i32, %c0_i32_0 : i32, i32, i32
  }
  func.func @transform_1(%arg0: i32, %arg1: i32) -> (i32, i32) {
    %c0_i32 = arith.constant 0 : i32
    %c0_i32_0 = arith.constant 0 : i32
    %c0_i32_1 = arith.constant 0 : i32
    return %c0_i32, %c0_i32_0 : i32, i32
  }
  func.func @transform_2(%arg0: i32, %arg1: i32) -> (i32, i32) {
    %c0_i32 = arith.constant 0 : i32
    %c0_i32_0 = arith.constant 0 : i32
    %c0_i32_1 = arith.constant 0 : i32
    return %c0_i32, %c0_i32_0 : i32, i32
  }
  func.func @transform_3(%arg0: i32, %arg1: i32) -> (i32, i32) {
    %c0_i32 = arith.constant 0 : i32
    %c0_i32_0 = arith.constant 0 : i32
    %c0_i32_1 = arith.constant 0 : i32
    return %c0_i32, %c0_i32_0 : i32, i32
  }
  func.func @transform_4(%arg0: i32, %arg1: i32) -> (i32, i32) {
    %c0_i32 = arith.constant 0 : i32
    %c0_i32_0 = arith.constant 0 : i32
    %c0_i32_1 = arith.constant 0 : i32
    return %c0_i32, %c0_i32_0 : i32, i32
  }
  func.func @transform_5(%arg0: i32, %arg1: i32) -> (i32, i32, i32) {
    %c0_i32 = arith.constant 0 : i32
    %c0_i32_0 = arith.constant 0 : i32
    %c0_i32_1 = arith.constant 0 : i32
    return %arg1, %c0_i32, %c0_i32_0 : i32, i32, i32
  }
  func.func @transform_6(%arg0: i32, %arg1: i32) -> (i32, i32, i32) {
    %c0_i32 = arith.constant 0 : i32
    %c0_i32_0 = arith.constant 0 : i32
    %c0_i32_1 = arith.constant 0 : i32
    return %arg1, %c0_i32, %c0_i32_0 : i32, i32, i32
  }
  func.func @transform_7(%arg0: i32, %arg1: i32) -> (i32, i32, i32) {
    %c0_i32 = arith.constant 0 : i32
    %c0_i32_0 = arith.constant 0 : i32
    %c0_i32_1 = arith.constant 0 : i32
    return %arg1, %c0_i32, %c0_i32_0 : i32, i32, i32
  }
  func.func @transform_8(%arg0: i32, %arg1: i32) -> (i32, i32, i32) {
    %c0_i32 = arith.constant 0 : i32
    %c0_i32_0 = arith.constant 0 : i32
    %c0_i32_1 = arith.constant 0 : i32
    return %arg1, %c0_i32, %c0_i32_0 : i32, i32, i32
  }
  func.func @transform_9(%arg0: i32, %arg1: i32) -> (i32, i32, i32) {
    %c0_i32 = arith.constant 0 : i32
    %c0_i32_0 = arith.constant 0 : i32
    %c0_i32_1 = arith.constant 0 : i32
    return %arg1, %c0_i32, %c0_i32_0 : i32, i32, i32
  }
  func.func @transform_10(%arg0: i32, %arg1: i32) -> (i32, i32, i32) {
    %c0_i32 = arith.constant 0 : i32
    %c0_i32_0 = arith.constant 0 : i32
    %c0_i32_1 = arith.constant 0 : i32
    return %arg1, %c0_i32, %c0_i32_0 : i32, i32, i32
  }
  func.func @transform_11(%arg0: i32, %arg1: i32) -> (i32, i32, i32) {
    %c0_i32 = arith.constant 0 : i32
    %c0_i32_0 = arith.constant 0 : i32
    %c0_i32_1 = arith.constant 0 : i32
    return %arg1, %c0_i32, %c0_i32_0 : i32, i32, i32
  }
  func.func @transform_12(%arg0: i32, %arg1: i32) -> (i32, i32, i32) {
    %c0_i32 = arith.constant 0 : i32
    %c0_i32_0 = arith.constant 0 : i32
    %c0_i32_1 = arith.constant 0 : i32
    return %arg0, %c0_i32, %c0_i32_0 : i32, i32, i32
  }
  func.func @transform_13(%arg0: i32, %arg1: i32) -> (i32, i32, i32) {
    %c0_i32 = arith.constant 0 : i32
    %c0_i32_0 = arith.constant 0 : i32
    %c0_i32_1 = arith.constant 0 : i32
    return %arg0, %c0_i32, %c0_i32_0 : i32, i32, i32
  }
}

</mosaic_0001>

<llo_original>
// kernel: tpu_custom_call.1
$region0: #{tpu_custom_call.1}
  #allocation0 [shape = 'u32[]', space=smem, size = 0x4, offset = 0x4, fixed_abs, tag = 'smem constant byte address 0x4 - core index']
  #allocation1 [shape = 'u32[72,128]{1,0:T(1,128)}', space=vmem, size = 0x9000, scoped, tag = 'internal scratch']
  #allocation2 [shape = 'f32[16,32]{1,0:T(8,128)}', space=vmem, size = 0x2000, scoped, tag = 'scratch operand']
  #allocation3 [shape = 'f32[16,32]{1,0:T(8,128)}', space=vmem, size = 0x2000, scoped, tag = 'scratch operand']
  #allocation4 [shape = 'f32[2,8]{1,0:T(2,128)}', space=vmem, size = 0x400, scoped, tag = 'scratch operand']
  %s0 = inlined_call_operand.vmem [shape: f32[2,8,64], index: 0, kind: input, shape index: {}]
  %s1 = inlined_call_operand.vmem [shape: bf16[64,32], index: 1, kind: input, shape index: {}]
  %s2 = inlined_call_operand.vmem [shape: f32[1,32], index: 2, kind: input, shape index: {}]
  %s3 = inlined_call_operand.vmem [shape: f32[1,32], index: 3, kind: input, shape index: {}]
  %s4 = inlined_call_operand.vmem [shape: f32[1,32], index: 4, kind: input, shape index: {}]
  %s5 = inlined_call_operand.vmem [shape: bf16[2,32,96], index: 5, kind: input, shape index: {}]
  %s6 = inlined_call_operand.vmem [shape: f32[2,1,96], index: 6, kind: input, shape index: {}]
  %s7 = inlined_call_operand.vmem [shape: bf16[2,32,32], index: 7, kind: input, shape index: {}]
  %s8 = inlined_call_operand.vmem [shape: bf16[2,32,64], index: 8, kind: input, shape index: {}]
  %s9 = inlined_call_operand.vmem [shape: f32[2,1,64], index: 9, kind: input, shape index: {}]
  %s10 = inlined_call_operand.vmem [shape: bf16[2,64,32], index: 10, kind: input, shape index: {}]
  %s11 = inlined_call_operand.vmem [shape: f32[2,6,32], index: 11, kind: input, shape index: {}]
  %s12 = inlined_call_operand.hbm [shape: f32[2,8,32], index: 12, kind: output, shape index: {0}]
  %s13 = inlined_call_operand.hbm [shape: f32[2,1,8], index: 13, kind: output, shape index: {1}]
  %14 = xla_tuple %s12, %s13
  %s15 = sld [smem:[#allocation0]]
  $region97: #{tpu_custom_call.1} parent=0
    _
  %s17 = ssub.s32 1, %s15
  %s18 = scalar_select 0, %s17, %s15
  $region1: #{tpu_custom_call.1} parent=0
    #allocation5 [shape = 'u8[8192]{0}', space=vmem, size = 0x2000, scoped, tag = 'output window, operand 0, single buffered']
    #allocation6 [shape = 's32[2]{0}', space=sflag, size = 0x8, scoped, tag = 'scoped memory for tpu_custom_call.1']
    #allocation7 [shape = 'u8[1024]{0}', space=vmem, size = 0x400, scoped, tag = 'output window, operand 1, single buffered']
    #allocation8 [shape = 's32[1]{0}', space=sflag, size = 0x4, scoped, tag = 'scoped memory for tpu_custom_call.1']
    %19 = vsyncpa [#allocation6], 0
    %20 = vsyncpa [#allocation8], 0
    loop: start=0, step=1, limit=4
    $region2: #{tpu_custom_call.1} parent=1 // loop_pre_header
      _
    $region3: #{tpu_custom_call.1} parent=1 // loop_header
      %s22 = sphi 0, %s26
      %p23 = scmp.ge.s32.totalorder %s22, 4
      %s29 = sphi 0, %s41
      %s30 = sphi 0, %s37
      %s31 = sphi 0, %s29
      %s32 = sphi 0, %s30
      %s33 = sphi 0, %s31
      %s34 = sphi 0, %s32
      %s44 = sphi 0, %s46
      %s47 = sphi 0, %s44
      %s48 = sphi 0, %s47
      %s64 = sphi 0, %s48
      %s68 = sphi 0, %s68
      %s70 = sphi 0, %s68
      %s71 = sphi 0, %s70
      %s85 = sphi 0, %s71
      %s89 = sphi 0, %s89
      %s91 = sphi 0, %s89
      %s92 = sphi 0, %s91
      %s106 = sphi 0, %s92
      %s110 = sphi 0, %s110
      %s112 = sphi 0, %s110
      %s113 = sphi 0, %s112
      %s127 = sphi 0, %s113
      %s131 = sphi 0, %s131
      %s133 = sphi 0, %s131
      %s134 = sphi 0, %s133
      %s148 = sphi 0, %s134
      %s154 = sphi 0, %s156
      %s157 = sphi 0, %s154
      %s158 = sphi 0, %s157
      %s174 = sphi 0, %s158
      %s180 = sphi 0, %s182
      %s183 = sphi 0, %s180
      %s184 = sphi 0, %s183
      %s200 = sphi 0, %s184
      %s206 = sphi 0, %s208
      %s209 = sphi 0, %s206
      %s210 = sphi 0, %s209
      %s226 = sphi 0, %s210
      %s232 = sphi 0, %s234
      %s235 = sphi 0, %s232
      %s236 = sphi 0, %s235
      %s252 = sphi 0, %s236
      %s258 = sphi 0, %s260
      %s261 = sphi 0, %s258
      %s262 = sphi 0, %s261
      %s278 = sphi 0, %s262
      %s284 = sphi 0, %s286
      %s287 = sphi 0, %s284
      %s288 = sphi 0, %s287
      %s304 = sphi 0, %s288
      %s310 = sphi 0, %s312
      %s313 = sphi 0, %s310
      %s314 = sphi 0, %s313
      %s330 = sphi 0, %s314
      %s336 = sphi 0, %s338
      %s339 = sphi 0, %s336
      %s340 = sphi 0, %s339
      %s356 = sphi 0, %s340
      %s362 = sphi 0, %s364
      %s365 = sphi 0, %s362
      %s366 = sphi 0, %s365
      %s382 = sphi 0, %s366
    $region4: #{tpu_custom_call.1} parent=1 // loop_header_branch
      %25 = sbr.rel (%p23) target = $region8
    $region5: #{tpu_custom_call.1} parent=1 // loop_body
      %s27 = ssub.s32 %s22, 1
      %s28 = ssub.s32 %s22, 2
      %s35 = sadd.s32 1, %s30
      %p36 = scmp.ge.s32.totalorder %s35, 2
      %s37 = scalar_select %p36, 0, %s35
      %s38 = sadd.s32 1, %s29
      %s39 = scalar_select %p36, %s38, %s29
      %p40 = scmp.ge.s32.totalorder %s39, 1
      %s41 = scalar_select %p40, 0, %s39
      %s42 = ssub.s32 %s29, %s41
      %p43 = scmp.eq.s32.totalorder %s42, 0
      %s45 = sadd.s32 %s44, 1
      %s46 = scalar_select %p43, %s44, %s45
      %p49 = pneg %p43
      %p50 = scmp.eq.s32.totalorder %s22, 1
      %p51 = por %p49, %p50
      %p52 = scmp.ne.s32.totalorder %s44, %s47
      %p53 = scmp.eq.s32.totalorder %s22, 0
      %p54 = por %p52, %p53
      %p55 = scmp.ne.s32.totalorder %s44, %s47
      %p56 = scmp.eq.s32.totalorder %s27, 1
      %p57 = por %p55, %p56
      %p58 = scmp.ne.s32.totalorder %s47, %s48
      %p59 = scmp.eq.s32.totalorder %s27, 0
      %p60 = por %p58, %p59
      %p61 = scmp.ne.s32.totalorder %s47, %s48
      %p62 = scmp.eq.s32.totalorder %s28, 1
      %p63 = por %p61, %p62
      %p65 = scmp.ne.s32.totalorder %s48, %s64
      %p66 = scmp.eq.s32.totalorder %s28, 0
      %p67 = por %p65, %p66
      %s69 = sadd.s32 %s68, 1
      %p72 = scmp.eq.s32.totalorder %s22, 1
      %p73 = scmp.ne.s32.totalorder %s68, %s70
      %p74 = scmp.eq.s32.totalorder %s22, 0
      %p75 = por %p73, %p74
      %p76 = scmp.ne.s32.totalorder %s68, %s70
      %p77 = scmp.eq.s32.totalorder %s27, 1
      %p78 = por %p76, %p77
      %p79 = scmp.ne.s32.totalorder %s70, %s71
      %p80 = scmp.eq.s32.totalorder %s27, 0
      %p81 = por %p79, %p80
      %p82 = scmp.ne.s32.totalorder %s70, %s71
      %p83 = scmp.eq.s32.totalorder %s28, 1
      %p84 = por %p82, %p83
      %p86 = scmp.ne.s32.totalorder %s71, %s85
      %p87 = scmp.eq.s32.totalorder %s28, 0
      %p88 = por %p86, %p87
      %s90 = sadd.s32 %s89, 1
      %p93 = scmp.eq.s32.totalorder %s22, 1
      %p94 = scmp.ne.s32.totalorder %s89, %s91
      %p95 = scmp.eq.s32.totalorder %s22, 0
      %p96 = por %p94, %p95
      %p97 = scmp.ne.s32.totalorder %s89, %s91
      %p98 = scmp.eq.s32.totalorder %s27, 1
      %p99 = por %p97, %p98
      %p100 = scmp.ne.s32.totalorder %s91, %s92
      %p101 = scmp.eq.s32.totalorder %s27, 0
      %p102 = por %p100, %p101
      %p103 = scmp.ne.s32.totalorder %s91, %s92
      %p104 = scmp.eq.s32.totalorder %s28, 1
      %p105 = por %p103, %p104
      %p107 = scmp.ne.s32.totalorder %s92, %s106
      %p108 = scmp.eq.s32.totalorder %s28, 0
      %p109 = por %p107, %p108
      %s111 = sadd.s32 %s110, 1
      %p114 = scmp.eq.s32.totalorder %s22, 1
      %p115 = scmp.ne.s32.totalorder %s110, %s112
      %p116 = scmp.eq.s32.totalorder %s22, 0
      %p117 = por %p115, %p116
      %p118 = scmp.ne.s32.totalorder %s110, %s112
      %p119 = scmp.eq.s32.totalorder %s27, 1
      %p120 = por %p118, %p119
      %p121 = scmp.ne.s32.totalorder %s112, %s113
      %p122 = scmp.eq.s32.totalorder %s27, 0
      %p123 = por %p121, %p122
      %p124 = scmp.ne.s32.totalorder %s112, %s113
      %p125 = scmp.eq.s32.totalorder %s28, 1
      %p126 = por %p124, %p125
      %p128 = scmp.ne.s32.totalorder %s113, %s127
      %p129 = scmp.eq.s32.totalorder %s28, 0
      %p130 = por %p128, %p129
      %s132 = sadd.s32 %s131, 1
      %p135 = scmp.eq.s32.totalorder %s22, 1
      %p136 = scmp.ne.s32.totalorder %s131, %s133
      %p137 = scmp.eq.s32.totalorder %s22, 0
      %p138 = por %p136, %p137
      %p139 = scmp.ne.s32.totalorder %s131, %s133
      %p140 = scmp.eq.s32.totalorder %s27, 1
      %p141 = por %p139, %p140
      %p142 = scmp.ne.s32.totalorder %s133, %s134
      %p143 = scmp.eq.s32.totalorder %s27, 0
      %p144 = por %p142, %p143
      %p145 = scmp.ne.s32.totalorder %s133, %s134
      %p146 = scmp.eq.s32.totalorder %s28, 1
      %p147 = por %p145, %p146
      %p149 = scmp.ne.s32.totalorder %s134, %s148
      %p150 = scmp.eq.s32.totalorder %s28, 0
      %p151 = por %p149, %p150
      %s152 = ssub.s32 %s30, %s37
      %p153 = scmp.eq.s32.totalorder %s152, 0
      %s155 = sadd.s32 %s154, 1
      %s156 = scalar_select %p153, %s154, %s155
      %p159 = pneg %p153
      %p160 = scmp.eq.s32.totalorder %s22, 1
      %p161 = por %p159, %p160
      %p162 = scmp.ne.s32.totalorder %s154, %s157
      %p163 = scmp.eq.s32.totalorder %s22, 0
      %p164 = por %p162, %p163
      %p165 = scmp.ne.s32.totalorder %s154, %s157
      %p166 = scmp.eq.s32.totalorder %s27, 1
      %p167 = por %p165, %p166
      %p168 = scmp.ne.s32.totalorder %s157, %s158
      %p169 = scmp.eq.s32.totalorder %s27, 0
      %p170 = por %p168, %p169
      %p171 = scmp.ne.s32.totalorder %s157, %s158
      %p172 = scmp.eq.s32.totalorder %s28, 1
      %p173 = por %p171, %p172
      %p175 = scmp.ne.s32.totalorder %s158, %s174
      %p176 = scmp.eq.s32.totalorder %s28, 0
      %p177 = por %p175, %p176
      %s178 = ssub.s32 %s30, %s37
      %p179 = scmp.eq.s32.totalorder %s178, 0
      %s181 = sadd.s32 %s180, 1
      %s182 = scalar_select %p179, %s180, %s181
      %p185 = pneg %p179
      %p186 = scmp.eq.s32.totalorder %s22, 1
      %p187 = por %p185, %p186
      %p188 = scmp.ne.s32.totalorder %s180, %s183
      %p189 = scmp.eq.s32.totalorder %s22, 0
      %p190 = por %p188, %p189
      %p191 = scmp.ne.s32.totalorder %s180, %s183
      %p192 = scmp.eq.s32.totalorder %s27, 1
      %p193 = por %p191, %p192
      %p194 = scmp.ne.s32.totalorder %s183, %s184
      %p195 = scmp.eq.s32.totalorder %s27, 0
      %p196 = por %p194, %p195
      %p197 = scmp.ne.s32.totalorder %s183, %s184
      %p198 = scmp.eq.s32.totalorder %s28, 1
      %p199 = por %p197, %p198
      %p201 = scmp.ne.s32.totalorder %s184, %s200
      %p202 = scmp.eq.s32.totalorder %s28, 0
      %p203 = por %p201, %p202
      %s204 = ssub.s32 %s30, %s37
      %p205 = scmp.eq.s32.totalorder %s204, 0
      %s207 = sadd.s32 %s206, 1
      %s208 = scalar_select %p205, %s206, %s207
      %p211 = pneg %p205
      %p212 = scmp.eq.s32.totalorder %s22, 1
      %p213 = por %p211, %p212
      %p214 = scmp.ne.s32.totalorder %s206, %s209
      %p215 = scmp.eq.s32.totalorder %s22, 0
      %p216 = por %p214, %p215
      %p217 = scmp.ne.s32.totalorder %s206, %s209
      %p218 = scmp.eq.s32.totalorder %s27, 1
      %p219 = por %p217, %p218
      %p220 = scmp.ne.s32.totalorder %s209, %s210
      %p221 = scmp.eq.s32.totalorder %s27, 0
      %p222 = por %p220, %p221
      %p223 = scmp.ne.s32.totalorder %s209, %s210
      %p224 = scmp.eq.s32.totalorder %s28, 1
      %p225 = por %p223, %p224
      %p227 = scmp.ne.s32.totalorder %s210, %s226
      %p228 = scmp.eq.s32.totalorder %s28, 0
      %p229 = por %p227, %p228
      %s230 = ssub.s32 %s30, %s37
      %p231 = scmp.eq.s32.totalorder %s230, 0
      %s233 = sadd.s32 %s232, 1
      %s234 = scalar_select %p231, %s232, %s233
      %p237 = pneg %p231
      %p238 = scmp.eq.s32.totalorder %s22, 1
      %p239 = por %p237, %p238
      %p240 = scmp.ne.s32.totalorder %s232, %s235
      %p241 = scmp.eq.s32.totalorder %s22, 0
      %p242 = por %p240, %p241
      %p243 = scmp.ne.s32.totalorder %s232, %s235
      %p244 = scmp.eq.s32.totalorder %s27, 1
      %p245 = por %p243, %p244
      %p246 = scmp.ne.s32.totalorder %s235, %s236
      %p247 = scmp.eq.s32.totalorder %s27, 0
      %p248 = por %p246, %p247
      %p249 = scmp.ne.s32.totalorder %s235, %s236
      %p250 = scmp.eq.s32.totalorder %s28, 1
      %p251 = por %p249, %p250
      %p253 = scmp.ne.s32.totalorder %s236, %s252
      %p254 = scmp.eq.s32.totalorder %s28, 0
      %p255 = por %p253, %p254
      %s256 = ssub.s32 %s30, %s37
      %p257 = scmp.eq.s32.totalorder %s256, 0
      %s259 = sadd.s32 %s258, 1
      %s260 = scalar_select %p257, %s258, %s259
      %p263 = pneg %p257
      %p264 = scmp.eq.s32.totalorder %s22, 1
      %p265 = por %p263, %p264
      %p266 = scmp.ne.s32.totalorder %s258, %s261
      %p267 = scmp.eq.s32.totalorder %s22, 0
      %p268 = por %p266, %p267
      %p269 = scmp.ne.s32.totalorder %s258, %s261
      %p270 = scmp.eq.s32.totalorder %s27, 1
      %p271 = por %p269, %p270
      %p272 = scmp.ne.s32.totalorder %s261, %s262
      %p273 = scmp.eq.s32.totalorder %s27, 0
      %p274 = por %p272, %p273
      %p275 = scmp.ne.s32.totalorder %s261, %s262
      %p276 = scmp.eq.s32.totalorder %s28, 1
      %p277 = por %p275, %p276
      %p279 = scmp.ne.s32.totalorder %s262, %s278
      %p280 = scmp.eq.s32.totalorder %s28, 0
      %p281 = por %p279, %p280
      %s282 = ssub.s32 %s30, %s37
      %p283 = scmp.eq.s32.totalorder %s282, 0
      %s285 = sadd.s32 %s284, 1
      %s286 = scalar_select %p283, %s284, %s285
      %p289 = pneg %p283
      %p290 = scmp.eq.s32.totalorder %s22, 1
      %p291 = por %p289, %p290
      %p292 = scmp.ne.s32.totalorder %s284, %s287
      %p293 = scmp.eq.s32.totalorder %s22, 0
      %p294 = por %p292, %p293
      %p295 = scmp.ne.s32.totalorder %s284, %s287
      %p296 = scmp.eq.s32.totalorder %s27, 1
      %p297 = por %p295, %p296
      %p298 = scmp.ne.s32.totalorder %s287, %s288
      %p299 = scmp.eq.s32.totalorder %s27, 0
      %p300 = por %p298, %p299
      %p301 = scmp.ne.s32.totalorder %s287, %s288
      %p302 = scmp.eq.s32.totalorder %s28, 1
      %p303 = por %p301, %p302
      %p305 = scmp.ne.s32.totalorder %s288, %s304
      %p306 = scmp.eq.s32.totalorder %s28, 0
      %p307 = por %p305, %p306
      %s308 = ssub.s32 %s30, %s37
      %p309 = scmp.eq.s32.totalorder %s308, 0
      %s311 = sadd.s32 %s310, 1
      %s312 = scalar_select %p309, %s310, %s311
      %p315 = pneg %p309
      %p316 = scmp.eq.s32.totalorder %s22, 1
      %p317 = por %p315, %p316
      %p318 = scmp.ne.s32.totalorder %s310, %s313
      %p319 = scmp.eq.s32.totalorder %s22, 0
      %p320 = por %p318, %p319
      %p321 = scmp.ne.s32.totalorder %s310, %s313
      %p322 = scmp.eq.s32.totalorder %s27, 1
      %p323 = por %p321, %p322
      %p324 = scmp.ne.s32.totalorder %s313, %s314
      %p325 = scmp.eq.s32.totalorder %s27, 0
      %p326 = por %p324, %p325
      %p327 = scmp.ne.s32.totalorder %s313, %s314
      %p328 = scmp.eq.s32.totalorder %s28, 1
      %p329 = por %p327, %p328
      %p331 = scmp.ne.s32.totalorder %s314, %s330
      %p332 = scmp.eq.s32.totalorder %s28, 0
      %p333 = por %p331, %p332
      %s334 = ssub.s32 %s29, %s41
      %p335 = scmp.eq.s32.totalorder %s334, 0
      %s337 = sadd.s32 %s336, 1
      %s338 = scalar_select %p335, %s336, %s337
      %p341 = pneg %p335
      %p342 = scmp.eq.s32.totalorder %s22, 1
      %p343 = por %p341, %p342
      %p344 = scmp.ne.s32.totalorder %s336, %s339
      %p345 = scmp.eq.s32.totalorder %s22, 0
      %p346 = por %p344, %p345
      %p347 = scmp.ne.s32.totalorder %s336, %s339
      %p348 = scmp.eq.s32.totalorder %s27, 1
      %p349 = por %p347, %p348
      %p350 = scmp.ne.s32.totalorder %s339, %s340
      %p351 = scmp.eq.s32.totalorder %s27, 0
      %p352 = por %p350, %p351
      %p353 = scmp.ne.s32.totalorder %s339, %s340
      %p354 = scmp.eq.s32.totalorder %s28, 1
      %p355 = por %p353, %p354
      %p357 = scmp.ne.s32.totalorder %s340, %s356
      %p358 = scmp.eq.s32.totalorder %s28, 0
      %p359 = por %p357, %p358
      %s360 = ssub.s32 %s29, %s41
      %p361 = scmp.eq.s32.totalorder %s360, 0
      %s363 = sadd.s32 %s362, 1
      %s364 = scalar_select %p361, %s362, %s363
      %p367 = pneg %p361
      %p368 = scmp.eq.s32.totalorder %s22, 1
      %p369 = por %p367, %p368
      %p370 = scmp.ne.s32.totalorder %s362, %s365
      %p371 = scmp.eq.s32.totalorder %s22, 0
      %p372 = por %p370, %p371
      %p373 = scmp.ne.s32.totalorder %s362, %s365
      %p374 = scmp.eq.s32.totalorder %s27, 1
      %p375 = por %p373, %p374
      %p376 = scmp.ne.s32.totalorder %s365, %s366
      %p377 = scmp.eq.s32.totalorder %s27, 0
      %p378 = por %p376, %p377
      %p379 = scmp.ne.s32.totalorder %s365, %s366
      %p380 = scmp.eq.s32.totalorder %s28, 1
      %p381 = por %p379, %p380
      %p383 = scmp.ne.s32.totalorder %s366, %s382
      %p384 = scmp.eq.s32.totalorder %s28, 0
      %p385 = por %p383, %p384
      %p386 = scmp.le.s32.totalorder 1, %s22
      %p387 = scmp.lt.s32.totalorder %s22, 3
      %p388 = pnand %p386, %p387
      %p389 = pneg %p388
      // Predicated region
      $region9: #{tpu_custom_call.1} parent=5 // pred_check
        _
      $region10: #{tpu_custom_call.1} parent=5 // pred_check_branch
        %391 = sbr.rel (%p388) target = $region12
      $region11: #{tpu_custom_call.1} parent=5 // pred_region
        %s392 = ssub.s32 %s22, 1
        // Predicated region
        $region13: #{tpu_custom_call.1} parent=11 // pred_check
          %p393 = pneg %p60
        $region14: #{tpu_custom_call.1} parent=11 // pred_check_branch
          %395 = sbr.rel (%p393) target = $region16
        $region15: #{tpu_custom_call.1} parent=11 // pred_region
          %s396 = smul.u32 2, %s31
          %p397 = scmp.lt.s32.totalorder %s396, 1
          %s398 = scalar_select %p397, %s396, 1
          %s399 = smul.addr %s398, 8
          %s400 = scalar_lea.vmem %s0, %s399
          %s401 = smul.u32 2, %s31
        $region16: #{tpu_custom_call.1} parent=11 // pred_fallthru
          _
        // Predicated region
        $region17: #{tpu_custom_call.1} parent=11 // pred_check
          %p402 = pneg %p81
        $region18: #{tpu_custom_call.1} parent=11 // pred_check_branch
          %404 = sbr.rel (%p402) target = $region20
        $region19: #{tpu_custom_call.1} parent=11 // pred_region
          _
        $region20: #{tpu_custom_call.1} parent=11 // pred_fallthru
          _
        // Predicated region
        $region21: #{tpu_custom_call.1} parent=11 // pred_check
          %p405 = pneg %p102
        $region22: #{tpu_custom_call.1} parent=11 // pred_check_branch
          %407 = sbr.rel (%p405) target = $region24
        $region23: #{tpu_custom_call.1} parent=11 // pred_region
          _
        $region24: #{tpu_custom_call.1} parent=11 // pred_fallthru
          _
        // Predicated region
        $region25: #{tpu_custom_call.1} parent=11 // pred_check
          %p408 = pneg %p123
        $region26: #{tpu_custom_call.1} parent=11 // pred_check_branch
          %410 = sbr.rel (%p408) target = $region28
        $region27: #{tpu_custom_call.1} parent=11 // pred_region
          _
        $region28: #{tpu_custom_call.1} parent=11 // pred_fallthru
          _
        // Predicated region
        $region29: #{tpu_custom_call.1} parent=11 // pred_check
          %p411 = pneg %p144
        $region30: #{tpu_custom_call.1} parent=11 // pred_check_branch
          %413 = sbr.rel (%p411) target = $region32
        $region31: #{tpu_custom_call.1} parent=11 // pred_region
          _
        $region32: #{tpu_custom_call.1} parent=11 // pred_fallthru
          _
      $region12: #{tpu_custom_call.1} parent=5 // pred_fallthru
        _
      %p414 = scmp.lt.s32.totalorder %s22, 2
      // Predicated region
      $region33: #{tpu_custom_call.1} parent=5 // pred_check
        %p415 = pneg %p414
      $region34: #{tpu_custom_call.1} parent=5 // pred_check_branch
        %417 = sbr.rel (%p415) target = $region36
      $region35: #{tpu_custom_call.1} parent=5 // pred_region
        // Predicated region
        $region37: #{tpu_custom_call.1} parent=35 // pred_check
          %p418 = pneg %p164
        $region38: #{tpu_custom_call.1} parent=35 // pred_check_branch
          %420 = sbr.rel (%p418) target = $region40
        $region39: #{tpu_custom_call.1} parent=35 // pred_region
          %p421 = scmp.lt.s32.totalorder %s30, 1
          %s422 = scalar_select %p421, %s30, 1
          %s423 = smul.addr %s422, 4
          %s424 = smul.addr %s423, 4
          %s425 = scalar_lea.vmem %s5, %s424
        $region40: #{tpu_custom_call.1} parent=35 // pred_fallthru
          _
        // Predicated region
        $region41: #{tpu_custom_call.1} parent=35 // pred_check
          %p426 = pneg %p190
        $region42: #{tpu_custom_call.1} parent=35 // pred_check_branch
          %428 = sbr.rel (%p426) target = $region44
        $region43: #{tpu_custom_call.1} parent=35 // pred_region
          %p429 = scmp.lt.s32.totalorder %s30, 1
          %s430 = scalar_select %p429, %s30, 1
          %s431 = scalar_lea.vmem %s6, %s430
        $region44: #{tpu_custom_call.1} parent=35 // pred_fallthru
          _
        // Predicated region
        $region45: #{tpu_custom_call.1} parent=35 // pred_check
          %p432 = pneg %p216
        $region46: #{tpu_custom_call.1} parent=35 // pred_check_branch
          %434 = sbr.rel (%p432) target = $region48
        $region47: #{tpu_custom_call.1} parent=35 // pred_region
          %p435 = scmp.lt.s32.totalorder %s30, 1
          %s436 = scalar_select %p435, %s30, 1
          %s437 = smul.addr %s436, 4
          %s438 = smul.addr %s437, 4
          %s439 = scalar_lea.vmem %s7, %s438
        $region48: #{tpu_custom_call.1} parent=35 // pred_fallthru
          _
        // Predicated region
        $region49: #{tpu_custom_call.1} parent=35 // pred_check
          %p440 = pneg %p242
        $region50: #{tpu_custom_call.1} parent=35 // pred_check_branch
          %442 = sbr.rel (%p440) target = $region52
        $region51: #{tpu_custom_call.1} parent=35 // pred_region
          %p443 = scmp.lt.s32.totalorder %s30, 1
          %s444 = scalar_select %p443, %s30, 1
          %s445 = smul.addr %s444, 4
          %s446 = smul.addr %s445, 4
          %s447 = scalar_lea.vmem %s8, %s446
        $region52: #{tpu_custom_call.1} parent=35 // pred_fallthru
          _
        // Predicated region
        $region53: #{tpu_custom_call.1} parent=35 // pred_check
          %p448 = pneg %p268
        $region54: #{tpu_custom_call.1} parent=35 // pred_check_branch
          %450 = sbr.rel (%p448) target = $region56
        $region55: #{tpu_custom_call.1} parent=35 // pred_region
          %p451 = scmp.lt.s32.totalorder %s30, 1
          %s452 = scalar_select %p451, %s30, 1
          %s453 = scalar_lea.vmem %s9, %s452
        $region56: #{tpu_custom_call.1} parent=35 // pred_fallthru
          _
        // Predicated region
        $region57: #{tpu_custom_call.1} parent=35 // pred_check
          %p454 = pneg %p294
        $region58: #{tpu_custom_call.1} parent=35 // pred_check_branch
          %456 = sbr.rel (%p454) target = $region60
        $region59: #{tpu_custom_call.1} parent=35 // pred_region
          %p457 = scmp.lt.s32.totalorder %s30, 1
          %s458 = scalar_select %p457, %s30, 1
          %s459 = smul.addr %s458, 8
          %s460 = smul.addr %s459, 4
          %s461 = scalar_lea.vmem %s10, %s460
        $region60: #{tpu_custom_call.1} parent=35 // pred_fallthru
          _
        // Predicated region
        $region61: #{tpu_custom_call.1} parent=35 // pred_check
          %p462 = pneg %p320
        $region62: #{tpu_custom_call.1} parent=35 // pred_check_branch
          %464 = sbr.rel (%p462) target = $region64
        $region63: #{tpu_custom_call.1} parent=35 // pred_region
          %p465 = scmp.lt.s32.totalorder %s30, 1
          %s466 = scalar_select %p465, %s30, 1
          %s467 = smul.addr %s466, 8
          %s468 = scalar_lea.vmem %s11, %s467
        $region64: #{tpu_custom_call.1} parent=35 // pred_fallthru
          _
      $region36: #{tpu_custom_call.1} parent=5 // pred_fallthru
        _
      %p469 = scmp.le.s32.totalorder 1, %s22
      %p470 = scmp.lt.s32.totalorder %s22, 3
      %p471 = pnand %p469, %p470
      %p472 = pneg %p471
      // Predicated region
      $region65: #{tpu_custom_call.1} parent=5 // pred_check
        _
      $region66: #{tpu_custom_call.1} parent=5 // pred_check_branch
        %474 = sbr.rel (%p471) target = $region68
      $region67: #{tpu_custom_call.1} parent=5 // pred_region
        %s475 = ssub.s32 %s22, 1
        %s476 = smul.u32 2, %s31
        %p477 = scmp.lt.s32.totalorder %s476, 1
        %s478 = scalar_select %p477, %s476, 1
        %s479 = smul.addr %s478, 8
        %s480 = scalar_lea.vmem %s0, %s479
        %p481 = pneg %p60
        %p482 = pneg %p57
        %p483 = pneg %p81
        %p484 = pneg %p78
        %p485 = pneg %p102
        %p486 = pneg %p99
        %p487 = pneg %p123
        %p488 = pneg %p120
        %p489 = pneg %p144
        %p490 = pneg %p141
        %p491 = scmp.lt.s32.totalorder %s32, 1
        %s492 = scalar_select %p491, %s32, 1
        %s493 = smul.addr %s492, 4
        %s494 = smul.addr %s493, 4
        %s495 = scalar_lea.vmem %s5, %s494
        %p496 = pneg %p170
        %p497 = pneg %p167
        %p498 = scmp.lt.s32.totalorder %s32, 1
        %s499 = scalar_select %p498, %s32, 1
        %s500 = scalar_lea.vmem %s6, %s499
        %p501 = pneg %p196
        %p502 = pneg %p193
        %p503 = scmp.lt.s32.totalorder %s32, 1
        %s504 = scalar_select %p503, %s32, 1
        %s505 = smul.addr %s504, 4
        %s506 = smul.addr %s505, 4
        %s507 = scalar_lea.vmem %s7, %s506
        %p508 = pneg %p222
        %p509 = pneg %p219
        %p510 = scmp.lt.s32.totalorder %s32, 1
        %s511 = scalar_select %p510, %s32, 1
        %s512 = smul.addr %s511, 4
        %s513 = smul.addr %s512, 4
        %s514 = scalar_lea.vmem %s8, %s513
        %p515 = pneg %p248
        %p516 = pneg %p245
        %p517 = scmp.lt.s32.totalorder %s32, 1
        %s518 = scalar_select %p517, %s32, 1
        %s519 = scalar_lea.vmem %s9, %s518
        %p520 = pneg %p274
        %p521 = pneg %p271
        %p522 = scmp.lt.s32.totalorder %s32, 1
        %s523 = scalar_select %p522, %s32, 1
        %s524 = smul.addr %s523, 8
        %s525 = smul.addr %s524, 4
        %s526 = scalar_lea.vmem %s10, %s525
        %p527 = pneg %p300
        %p528 = pneg %p297
        %p529 = scmp.lt.s32.totalorder %s32, 1
        %s530 = scalar_select %p529, %s32, 1
        %s531 = smul.addr %s530, 8
        %s532 = scalar_lea.vmem %s11, %s531
        %p533 = pneg %p326
        %p534 = pneg %p323
        %p535 = pneg %p352
        %p536 = pneg %p349
        %p537 = pneg %p378
        %p538 = pneg %p375
        %s539 = smul.u32 2, %s31
        %p540 = scmp.lt.s32.totalorder %s539, 1
        %s541 = scalar_select %p540, %s539, 1
        %s542 = smul.addr %s541, 8
        %s543 = scalar_lea.vmem %s0, %s542
        %s544 = smul.u32 2, %s31
        %p545 = scmp.lt.s32.totalorder %s32, 1
        %s546 = scalar_select %p545, %s32, 1
        %s547 = smul.addr %s546, 4
        %s548 = smul.addr %s547, 4
        %s549 = scalar_lea.vmem %s5, %s548
        %p550 = scmp.lt.s32.totalorder %s32, 1
        %s551 = scalar_select %p550, %s32, 1
        %s552 = scalar_lea.vmem %s6, %s551
        %p553 = scmp.lt.s32.totalorder %s32, 1
        %s554 = scalar_select %p553, %s32, 1
        %s555 = smul.addr %s554, 4
        %s556 = smul.addr %s555, 4
        %s557 = scalar_lea.vmem %s7, %s556
        %p558 = scmp.lt.s32.totalorder %s32, 1
        %s559 = scalar_select %p558, %s32, 1
        %s560 = smul.addr %s559, 4
        %s561 = smul.addr %s560, 4
        %s562 = scalar_lea.vmem %s8, %s561
        %p563 = scmp.lt.s32.totalorder %s32, 1
        %s564 = scalar_select %p563, %s32, 1
        %s565 = scalar_lea.vmem %s9, %s564
        %p566 = scmp.lt.s32.totalorder %s32, 1
        %s567 = scalar_select %p566, %s32, 1
        %s568 = smul.addr %s567, 8
        %s569 = smul.addr %s568, 4
        %s570 = scalar_lea.vmem %s10, %s569
        %p571 = scmp.lt.s32.totalorder %s32, 1
        %s572 = scalar_select %p571, %s32, 1
        %s573 = smul.addr %s572, 8
        %s574 = scalar_lea.vmem %s11, %s573
        %s575 = smul.u32 2, %s31
        %s576 = smul.u32 2, %s31
        %p578 = scmp.eq.s32.totalorder %s32, 0
        // Predicated region
        $region69: #{tpu_custom_call.1} parent=67 // pred_check
          %p579 = pneg %p578
        $region70: #{tpu_custom_call.1} parent=67 // pred_check_branch
          %581 = sbr.rel (%p579) target = $region72
        $region71: #{tpu_custom_call.1} parent=67 // pred_region
          %v582 = vld [vmem:[%s1] sm:$0xf]
          %v583 = vld [vmem:[%s1 + $0x4] sm:$0xf]
          %v584 = vld [vmem:[%s1 + $0x8] sm:$0xf]
          %v585 = vld [vmem:[%s1 + $0xc] sm:$0xf]
          %v586 = vld [vmem:[%s1 + $0x10] sm:$0xf]
          %v587 = vld [vmem:[%s1 + $0x14] sm:$0xf]
          %v588 = vld [vmem:[%s1 + $0x18] sm:$0xf]
          %v589 = vld [vmem:[%s1 + $0x1c] sm:$0xf]
          %v590 = vld [vmem:[%s2] sm:$0x1]
          %v591 = vld [vmem:[%s3] sm:$0x1]
          %v592 = vld [vmem:[%s4] sm:$0x1]
          %v593 = vld [vmem:[%s543] sm:$0xff]
          %v594 = vpack.c.bf16 %v593, %v593
          %v596 = vperm.slane %v590, 0
          %v606 = vunpack.c.l.b16 %v582
          %v607 = vunpack.c.l.b16 %v583
          %v608 = vunpack.c.l.b16 %v584
          %v609 = vunpack.c.l.b16 %v585
          %v610 = vunpack.c.l.b16 %v586
          %v611 = vunpack.c.l.b16 %v587
          %v612 = vunpack.c.l.b16 %v588
          %v613 = vunpack.c.l.b16 %v589
          %v614 = vpack.c.b16 %v607, %v606
          %v615 = vpack.c.b16 %v609, %v608
          %v616 = vpack.c.b16 %v611, %v610
          %v617 = vpack.c.b16 %v613, %v612
          %vm622 = vcmask 523264
          %v624 = vsel %vm622, %v594, 0
          %626 = vmatpush.bf16.msra.mxu0 0
          %627 = vmatpush.bf16.msra.mxu0 0
          %628 = vmatpush.bf16.msra.mxu0 0
          %629 = vmatpush.bf16.msra.mxu0 0
          %630 = vmatpush.bf16.msra.mxu0 %v617
          %631 = vmatpush.bf16.msra.mxu0 %v616
          %632 = vmatpush.bf16.msra.mxu0 %v615
          %633 = vmatpush.bf16.msra.mxu0 %v614
          %634 = vmatmul.bf16.gmra.mxu0 %v624
          %v635 = vpop.f32.mrf.mxu0
          %v636 = vadd.f32 %v596, %v635
          %v637 = vpop.f32.mrf.mxu0
          %638 = vdwg.mxu0
          %v639 = vmax.f32 %v636, 0.0
          %vm640 = vcmask 261120
          %v641 = vsel %vm640, %v639, 0.0
          %642 = vadd.xlane.f32.xlu0 %v641
          %v643 = vpop.xlane.xlu0 %642
          %v644 = vrcp.pop 32.0
          %v645 = vmul.f32 32.0, %v644
          %v646 = vsub.f32 1.0, %v645
          %v647 = vmul.f32 %v644, %v646
          %v648 = vadd.f32 %v644, %v647
          %vm649 = vweird.f32 %v644
          %v650 = vsel %vm649, %v644, %v648
          %v651 = vmul.f32 %v643, %v650
          %v652 = vsub.f32 %v639, %v651
          %v653 = vmul.f32 %v652, %v652
          %v654 = vsel %vm640, %v653, 0.0
          %655 = vadd.xlane.f32.xlu0 %v654
          %v656 = vpop.xlane.xlu0 %655
          %v657 = vmul.f32 %v656, %v650
          %v658 = vadd.f32 %v657, 1e-05
          %v659 = vrsqrt.pop %v658
          %v660 = vmul.f32 %v659, %v658
          %v661 = vmul.f32 %v660, %v659
          %v662 = vmul.f32 0.5, %v661
          %v663 = vsub.f32 1.5, %v662
          %v664 = vmul.f32 %v659, %v663
          %vm665 = vweird.f32 %v658
          %vm666 = vweird.f32 %v659
          %vm667 = vmor %vm665, %vm666
          %v668 = vsel %vm667, %v659, %v664
          %v669 = vmul.f32 %v652, %v668
          %v671 = vperm.slane %v591, 0
          %v673 = vmul.f32 %v669, %v671
          %v675 = vperm.slane %v592, 0
          %v677 = vadd.f32 %v673, %v675
          %v678 = vsel %vm622, %v593, 0.0
          %679 = vadd.xlane.f32.xlu0 %v678
          %v680 = vpop.xlane.xlu0 %679
          %vm681 = vcmp.eq.f32.partialorder %v680, 0.0
          %v682 = vsel %vm681, 1, 0
          %vm683 = vcmp.eq.s32.totalorder %v682, 1
          %v684 = vsel %vm683, 0.0, %v677
          %685 = vst.msk [vmem:[#allocation2] sm:$0xff] %vm640, %v684
          %v686 = vsel %vm640, %v684, 0.0
          %687 = vadd.xlane.f32.xlu0 %v686
          %v688 = vpop.xlane.xlu0 %687
          %vm689 = vcmp.eq.f32.partialorder %v688, 0.0
          %v690 = vsel %vm689, 1.0, 0.0
          %691 = vxpose.xlu0.b32.start [1/16] %v690, 128
          %692 = vxpose.xlu0.b32.cont [2/16] 0.0, 128
          %693 = vxpose.xlu0.b32.cont [3/16] 0.0, 128
          %694 = vxpose.xlu0.b32.cont [4/16] 0.0, 128
          %695 = vxpose.xlu0.b32.cont [5/16] 0.0, 128
          %696 = vxpose.xlu0.b32.cont [6/16] 0.0, 128
          %697 = vxpose.xlu0.b32.cont [7/16] 0.0, 128
          %698 = vxpose.xlu0.b32.cont [8/16] 0.0, 128
          %699 = vxpose.xlu0.b32.cont [9/16] 0.0, 128
          %700 = vxpose.xlu0.b32.cont [10/16] 0.0, 128
          %701 = vxpose.xlu0.b32.cont [11/16] 0.0, 128
          %702 = vxpose.xlu0.b32.cont [12/16] 0.0, 128
          %703 = vxpose.xlu0.b32.cont [13/16] 0.0, 128
          %704 = vxpose.xlu0.b32.cont [14/16] 0.0, 128
          %705 = vxpose.xlu0.b32.cont [15/16] 0.0, 128
          %706 = vxpose.xlu0.b32.end [16/16] 0.0, 128
          %v707 = vpop.trf.xlu0
          %v708 = vpop.trf.xlu0
          %v709 = vpop.trf.xlu0
          %v710 = vpop.trf.xlu0
          %v711 = vpop.trf.xlu0
          %v712 = vpop.trf.xlu0
          %v713 = vpop.trf.xlu0
          %v714 = vpop.trf.xlu0
          %v715 = vpop.trf.xlu0
          %v716 = vpop.trf.xlu0
          %v717 = vpop.trf.xlu0
          %v718 = vpop.trf.xlu0
          %v719 = vpop.trf.xlu0
          %v720 = vpop.trf.xlu0
          %v721 = vpop.trf.xlu0
          %v722 = vpop.trf.xlu0
          %v723 = vmul.f32 %v707, -1e+09
          %vm724 = vcmask 57344
          %725 = vst.msk [vmem:[#allocation4] sm:$0x1] %vm724, %v723
          %726 = vst.msk [vmem:[#allocation7] sm:$0x1] %vm724, %v707
          %s727 = scalar_lea.vmem %s543, 8
          %v728 = vld [vmem:[%s727] sm:$0xff]
          %v729 = vpack.c.bf16 %v728, %v728
          %v731 = vsel %vm622, %v729, 0
          %733 = vmatpush.bf16.msra.mxu0 0
          %734 = vmatpush.bf16.msra.mxu0 0
          %735 = vmatpush.bf16.msra.mxu0 0
          %736 = vmatpush.bf16.msra.mxu0 0
          %737 = vmatpush.bf16.msra.mxu0 %v617
          %738 = vmatpush.bf16.msra.mxu0 %v616
          %739 = vmatpush.bf16.msra.mxu0 %v615
          %740 = vmatpush.bf16.msra.mxu0 %v614
          %741 = vmatmul.bf16.gmra.mxu0 %v731
          %v742 = vpop.f32.mrf.mxu0
          %v743 = vadd.f32 %v596, %v742
          %v744 = vpop.f32.mrf.mxu0
          %745 = vdwg.mxu0
          %v746 = vmax.f32 %v743, 0.0
          %v747 = vsel %vm640, %v746, 0.0
          %748 = vadd.xlane.f32.xlu0 %v747
          %v749 = vpop.xlane.xlu0 %748
          %v750 = vmul.f32 %v749, %v650
          %v751 = vsub.f32 %v746, %v750
          %v752 = vmul.f32 %v751, %v751
          %v753 = vsel %vm640, %v752, 0.0
          %754 = vadd.xlane.f32.xlu0 %v753
          %v755 = vpop.xlane.xlu0 %754
          %v756 = vmul.f32 %v755, %v650
          %v757 = vadd.f32 %v756, 1e-05
          %v758 = vrsqrt.pop %v757
          %v759 = vmul.f32 %v758, %v757
          %v760 = vmul.f32 %v759, %v758
          %v761 = vmul.f32 0.5, %v760
          %v762 = vsub.f32 1.5, %v761
          %v763 = vmul.f32 %v758, %v762
          %vm764 = vweird.f32 %v757
          %vm765 = vweird.f32 %v758
          %vm766 = vmor %vm764, %vm765
          %v767 = vsel %vm766, %v758, %v763
          %v768 = vmul.f32 %v751, %v767
          %v769 = vmul.f32 %v768, %v671
          %v770 = vadd.f32 %v769, %v675
          %v771 = vsel %vm622, %v728, 0.0
          %772 = vadd.xlane.f32.xlu0 %v771
          %v773 = vpop.xlane.xlu0 %772
          %vm774 = vcmp.eq.f32.partialorder %v773, 0.0
          %v775 = vsel %vm774, 1, 0
          %vm776 = vcmp.eq.s32.totalorder %v775, 1
          %v777 = vsel %vm776, 0.0, %v770
          %778 = vst.msk [vmem:[#allocation2 + $0x8] sm:$0xff] %vm640, %v777
          %v779 = vsel %vm640, %v777, 0.0
          %780 = vadd.xlane.f32.xlu0 %v779
          %v781 = vpop.xlane.xlu0 %780
          %vm782 = vcmp.eq.f32.partialorder %v781, 0.0
          %v783 = vsel %vm782, 1.0, 0.0
          %784 = vxpose.xlu0.b32.start [1/16] %v783, 128
          %785 = vxpose.xlu0.b32.cont [2/16] 0.0, 128
          %786 = vxpose.xlu0.b32.cont [3/16] 0.0, 128
          %787 = vxpose.xlu0.b32.cont [4/16] 0.0, 128
          %788 = vxpose.xlu0.b32.cont [5/16] 0.0, 128
          %789 = vxpose.xlu0.b32.cont [6/16] 0.0, 128
          %790 = vxpose.xlu0.b32.cont [7/16] 0.0, 128
          %791 = vxpose.xlu0.b32.cont [8/16] 0.0, 128
          %792 = vxpose.xlu0.b32.cont [9/16] 0.0, 128
          %793 = vxpose.xlu0.b32.cont [10/16] 0.0, 128
          %794 = vxpose.xlu0.b32.cont [11/16] 0.0, 128
          %795 = vxpose.xlu0.b32.cont [12/16] 0.0, 128
          %796 = vxpose.xlu0.b32.cont [13/16] 0.0, 128
          %797 = vxpose.xlu0.b32.cont [14/16] 0.0, 128
          %798 = vxpose.xlu0.b32.cont [15/16] 0.0, 128
          %799 = vxpose.xlu0.b32.end [16/16] 0.0, 128
          %v800 = vpop.trf.xlu0
          %v801 = vpop.trf.xlu0
          %v802 = vpop.trf.xlu0
          %v803 = vpop.trf.xlu0
          %v804 = vpop.trf.xlu0
          %v805 = vpop.trf.xlu0
          %v806 = vpop.trf.xlu0
          %v807 = vpop.trf.xlu0
          %v808 = vpop.trf.xlu0
          %v809 = vpop.trf.xlu0
          %v810 = vpop.trf.xlu0
          %v811 = vpop.trf.xlu0
          %v812 = vpop.trf.xlu0
          %v813 = vpop.trf.xlu0
          %v814 = vpop.trf.xlu0
          %v815 = vpop.trf.xlu0
          %v816 = vmul.f32 %v800, -1e+09
          %817 = vst.msk [vmem:[#allocation4 + $0x1] sm:$0x1] %vm724, %v816
          %s818 = scalar_lea.vmem [#allocation7], 1
          %819 = vst.msk [vmem:[%s818] sm:$0x1] %vm724, %v800
        $region72: #{tpu_custom_call.1} parent=67 // pred_fallthru
          _
        %v820 = vld [vmem:[#allocation2] sm:$0xff]
        %v821 = vld [vmem:[#allocation2 + $0x8] sm:$0xff]
        %v822 = vpack.c.bf16 %v821, %v820
        %v823 = vld [vmem:[%s549] sm:$0xf]
        %v824 = vld [vmem:[%s549 + $0x4] sm:$0xf]
        %v825 = vld [vmem:[%s549 + $0x8] sm:$0xf]
        %v826 = vld [vmem:[%s549 + $0xc] sm:$0xf]
        %v827 = vld [vmem:[%s552] sm:$0x1]
        %v829 = vperm.slane %v827, 0
        %v835 = vunpack.c.l.b16 %v823
        %v836 = vunpack.c.l.b16 %v824
        %v837 = vunpack.c.l.b16 %v825
        %v838 = vunpack.c.l.b16 %v826
        %v839 = vpack.c.b16 %v836, %v835
        %v840 = vpack.c.b16 %v838, %v837
        %vm843 = vcmask 261120
        %v845 = vsel %vm843, %v822, 0
        %847 = vmatpush.bf16.msra.mxu0 0
        %848 = vmatpush.bf16.msra.mxu0 0
        %849 = vmatpush.bf16.msra.mxu0 0
        %850 = vmatpush.bf16.msra.mxu0 0
        %851 = vmatpush.bf16.msra.mxu0 0
        %852 = vmatpush.bf16.msra.mxu0 0
        %853 = vmatpush.bf16.msra.mxu0 %v840
        %854 = vmatpush.bf16.msra.mxu0 %v839
        %855 = vmatmul.bf16.gmra.mxu0 %v845
        %v856 = vpop.f32.mrf.mxu0
        %v857 = vadd.f32 %v829, %v856
        %v858 = vpop.f32.mrf.mxu0
        %v859 = vadd.f32 %v829, %v858
        %860 = vdwg.mxu0
        %v861 = vld [vmem:[%s557] sm:$0xf]
        %v862 = vld [vmem:[%s557 + $0x4] sm:$0xf]
        %v863 = vld [vmem:[%s557 + $0x8] sm:$0xf]
        %v864 = vld [vmem:[%s557 + $0xc] sm:$0xf]
        %v865 = vld [vmem:[#allocation4] sm:$0x1]
        %v866 = vpack.c.bf16 %v857, %v857
        %v867 = vperm.slane %v865, 0
        %869 = vrot.lane.b32.xlu0 %v866, 96
        %v870 = vpop.permute.xlu0 %869
        %vm871 = vcmask 64512
        %v873 = vsel %vm871, %v866, 0
        %v876 = vsel %vm871, %v870, 0
        %878 = vmatpush.bf16.xpose.msra.mxu0 0
        %879 = vmatpush.bf16.xpose.msra.mxu0 0
        %880 = vmatpush.bf16.xpose.msra.mxu0 0
        %881 = vmatpush.bf16.xpose.msra.mxu0 0
        %882 = vmatpush.bf16.xpose.msra.mxu0 0
        %883 = vmatpush.bf16.xpose.msra.mxu0 0
        %884 = vmatpush.bf16.xpose.msra.mxu0 0
        %885 = vmatpush.bf16.xpose.msra.mxu0 %v876
        %886 = vmatmul.bf16.gmra.mxu0 %v873
        %v887 = vpop.f32.mrf.mxu0
        %v888 = vadd.f32 %v867, %v887
        %v889 = vpop.f32.mrf.mxu0
        %890 = vdwg.mxu0
        %v891 = vsel %vm871, %v888, -inf
        %892 = vmax.xlane.f32.xlu0 %v891
        %v893 = vpop.xlane.xlu0 %892
        %v894 = vsub.f32 %v888, %v893
        %v895 = vmul.f32 %v894, 1.442695
        %v896 = vpow.pop %v895
        %v897 = vsel %vm871, %v896, 0.0
        %898 = vadd.xlane.f32.xlu0 %v897
        %v899 = vpop.xlane.xlu0 %898
        %v900 = vrcp.pop %v899
        %v901 = vmul.f32 %v896, %v900
        %v902 = vpack.c.bf16 %v901, %v901
        %903 = vrot.lane.b32.xlu0 %v866, 64
        %v904 = vpop.permute.xlu0 %903
        %v906 = vsel %vm871, %v902, 0
        %vm908 = vcmask 1043456
        %v910 = vsel %vm908, %v904, 0
        %912 = vmatpush.bf16.msra.mxu0 0
        %913 = vmatpush.bf16.msra.mxu0 0
        %914 = vmatpush.bf16.msra.mxu0 0
        %915 = vmatpush.bf16.msra.mxu0 0
        %916 = vmatpush.bf16.msra.mxu0 0
        %917 = vmatpush.bf16.msra.mxu0 0
        %918 = vmatpush.bf16.msra.mxu0 0
        %919 = vmatpush.bf16.msra.mxu0 %v910
        %920 = vmatmul.bf16.gmra.mxu0 %v906
        %v921 = vpop.f32.mrf.mxu0
        %v922 = vadd.f32 0.0, %v921
        %v923 = vpop.f32.mrf.mxu0
        %924 = vdwg.mxu0
        %v925 = vpack.c.bf16 %v922, %v922
        %926 = vrot.lane.b32.xlu0 %v866, 120
        %v927 = vpop.permute.xlu0 %926
        %928 = vrot.lane.b32.xlu0 %v866, 88
        %v929 = vpop.permute.xlu0 %928
        %v931 = vsel %vm871, %v927, 0
        %v934 = vsel %vm871, %v929, 0
        %936 = vmatpush.bf16.xpose.msra.mxu0 0
        %937 = vmatpush.bf16.xpose.msra.mxu0 0
        %938 = vmatpush.bf16.xpose.msra.mxu0 0
        %939 = vmatpush.bf16.xpose.msra.mxu0 0
        %940 = vmatpush.bf16.xpose.msra.mxu0 0
        %941 = vmatpush.bf16.xpose.msra.mxu0 0
        %942 = vmatpush.bf16.xpose.msra.mxu0 0
        %943 = vmatpush.bf16.xpose.msra.mxu0 %v934
        %944 = vmatmul.bf16.gmra.mxu0 %v931
        %v945 = vpop.f32.mrf.mxu0
        %v946 = vadd.f32 %v867, %v945
        %v947 = vpop.f32.mrf.mxu0
        %948 = vdwg.mxu0
        %v949 = vsel %vm871, %v946, -inf
        %950 = vmax.xlane.f32.xlu0 %v949
        %v951 = vpop.xlane.xlu0 %950
        %v952 = vsub.f32 %v946, %v951
        %v953 = vmul.f32 %v952, 1.442695
        %v954 = vpow.pop %v953
        %v955 = vsel %vm871, %v954, 0.0
        %956 = vadd.xlane.f32.xlu0 %v955
        %v957 = vpop.xlane.xlu0 %956
        %v958 = vrcp.pop %v957
        %v959 = vmul.f32 %v954, %v958
        %v960 = vpack.c.bf16 %v959, %v959
        %961 = vrot.lane.b32.xlu0 %v866, 56
        %v962 = vpop.permute.xlu0 %961
        %v964 = vsel %vm871, %v960, 0
        %v967 = vsel %vm908, %v962, 0
        %969 = vmatpush.bf16.msra.mxu0 0
        %970 = vmatpush.bf16.msra.mxu0 0
        %971 = vmatpush.bf16.msra.mxu0 0
        %972 = vmatpush.bf16.msra.mxu0 0
        %973 = vmatpush.bf16.msra.mxu0 0
        %974 = vmatpush.bf16.msra.mxu0 0
        %975 = vmatpush.bf16.msra.mxu0 0
        %976 = vmatpush.bf16.msra.mxu0 %v967
        %977 = vmatmul.bf16.gmra.mxu0 %v964
        %v978 = vpop.f32.mrf.mxu0
        %v979 = vadd.f32 0.0, %v978
        %v980 = vpop.f32.mrf.mxu0
        %981 = vdwg.mxu0
        %v982 = vpack.c.bf16 %v979, %v979
        %v984 = vsel %vm871, %v982, 0
        %v987 = vsel %vm908, %v862, 0
        %989 = vmatpush.bf16.msra.mxu0 0
        %990 = vmatpush.bf16.msra.mxu0 0
        %991 = vmatpush.bf16.msra.mxu0 0
        %992 = vmatpush.bf16.msra.mxu0 0
        %993 = vmatpush.bf16.msra.mxu0 0
        %994 = vmatpush.bf16.msra.mxu0 0
        %995 = vmatpush.bf16.msra.mxu0 0
        %996 = vmatpush.bf16.msra.mxu0 %v987
        %997 = vmatmul.bf16.gmra.mxu0 %v984
        %v998 = vpop.f32.mrf.mxu0
        %v999 = vadd.f32 0.0, %v998
        %v1000 = vpop.f32.mrf.mxu0
        %1001 = vdwg.mxu0
        %v1003 = vsel %vm871, %v925, 0
        %v1006 = vsel %vm908, %v861, 0
        %1008 = vmatpush.bf16.msra.mxu0 0
        %1009 = vmatpush.bf16.msra.mxu0 0
        %1010 = vmatpush.bf16.msra.mxu0 0
        %1011 = vmatpush.bf16.msra.mxu0 0
        %1012 = vmatpush.bf16.msra.mxu0 0
        %1013 = vmatpush.bf16.msra.mxu0 0
        %1014 = vmatpush.bf16.msra.mxu0 0
        %1015 = vmatpush.bf16.msra.mxu0 %v1006
        %1016 = vmatmul.bf16.gmra.mxu0 %v1003
        %v1017 = vpop.f32.mrf.mxu0
        %v1018 = vadd.f32 %v999, %v1017
        %v1019 = vpop.f32.mrf.mxu0
        %1020 = vdwg.mxu0
        %1021 = vrot.lane.b32.xlu0 %v866, 112
        %v1022 = vpop.permute.xlu0 %1021
        %1023 = vrot.lane.b32.xlu0 %v866, 80
        %v1024 = vpop.permute.xlu0 %1023
        %v1026 = vsel %vm871, %v1022, 0
        %v1029 = vsel %vm871, %v1024, 0
        %1031 = vmatpush.bf16.xpose.msra.mxu0 0
        %1032 = vmatpush.bf16.xpose.msra.mxu0 0
        %1033 = vmatpush.bf16.xpose.msra.mxu0 0
        %1034 = vmatpush.bf16.xpose.msra.mxu0 0
        %1035 = vmatpush.bf16.xpose.msra.mxu0 0
        %1036 = vmatpush.bf16.xpose.msra.mxu0 0
        %1037 = vmatpush.bf16.xpose.msra.mxu0 0
        %1038 = vmatpush.bf16.xpose.msra.mxu0 %v1029
        %1039 = vmatmul.bf16.gmra.mxu0 %v1026
        %v1040 = vpop.f32.mrf.mxu0
        %v1041 = vadd.f32 %v867, %v1040
        %v1042 = vpop.f32.mrf.mxu0
        %1043 = vdwg.mxu0
        %v1044 = vsel %vm871, %v1041, -inf
        %1045 = vmax.xlane.f32.xlu0 %v1044
        %v1046 = vpop.xlane.xlu0 %1045
        %v1047 = vsub.f32 %v1041, %v1046
        %v1048 = vmul.f32 %v1047, 1.442695
        %v1049 = vpow.pop %v1048
        %v1050 = vsel %vm871, %v1049, 0.0
        %1051 = vadd.xlane.f32.xlu0 %v1050
        %v1052 = vpop.xlane.xlu0 %1051
        %v1053 = vrcp.pop %v1052
        %v1054 = vmul.f32 %v1049, %v1053
        %v1055 = vpack.c.bf16 %v1054, %v1054
        %1056 = vrot.lane.b32.xlu0 %v866, 48
        %v1057 = vpop.permute.xlu0 %1056
        %v1059 = vsel %vm871, %v1055, 0
        %v1062 = vsel %vm908, %v1057, 0
        %1064 = vmatpush.bf16.msra.mxu0 0
        %1065 = vmatpush.bf16.msra.mxu0 0
        %1066 = vmatpush.bf16.msra.mxu0 0
        %1067 = vmatpush.bf16.msra.mxu0 0
        %1068 = vmatpush.bf16.msra.mxu0 0
        %1069 = vmatpush.bf16.msra.mxu0 0
        %1070 = vmatpush.bf16.msra.mxu0 0
        %1071 = vmatpush.bf16.msra.mxu0 %v1062
        %1072 = vmatmul.bf16.gmra.mxu0 %v1059
        %v1073 = vpop.f32.mrf.mxu0
        %v1074 = vadd.f32 0.0, %v1073
        %v1075 = vpop.f32.mrf.mxu0
        %1076 = vdwg.mxu0
        %v1077 = vpack.c.bf16 %v1074, %v1074
        %v1079 = vsel %vm871, %v1077, 0
        %v1082 = vsel %vm908, %v863, 0
        %1084 = vmatpush.bf16.msra.mxu0 0
        %1085 = vmatpush.bf16.msra.mxu0 0
        %1086 = vmatpush.bf16.msra.mxu0 0
        %1087 = vmatpush.bf16.msra.mxu0 0
        %1088 = vmatpush.bf16.msra.mxu0 0
        %1089 = vmatpush.bf16.msra.mxu0 0
        %1090 = vmatpush.bf16.msra.mxu0 0
        %1091 = vmatpush.bf16.msra.mxu0 %v1082
        %1092 = vmatmul.bf16.gmra.mxu0 %v1079
        %v1093 = vpop.f32.mrf.mxu0
        %v1094 = vadd.f32 0.0, %v1093
        %v1095 = vpop.f32.mrf.mxu0
        %1096 = vdwg.mxu0
        %v1097 = vadd.f32 %v1018, %v1094
        %1098 = vrot.lane.b32.xlu0 %v866, 104
        %v1099 = vpop.permute.xlu0 %1098
        %1100 = vrot.lane.b32.xlu0 %v866, 72
        %v1101 = vpop.permute.xlu0 %1100
        %v1103 = vsel %vm871, %v1099, 0
        %v1106 = vsel %vm871, %v1101, 0
        %1108 = vmatpush.bf16.xpose.msra.mxu0 0
        %1109 = vmatpush.bf16.xpose.msra.mxu0 0
        %1110 = vmatpush.bf16.xpose.msra.mxu0 0
        %1111 = vmatpush.bf16.xpose.msra.mxu0 0
        %1112 = vmatpush.bf16.xpose.msra.mxu0 0
        %1113 = vmatpush.bf16.xpose.msra.mxu0 0
        %1114 = vmatpush.bf16.xpose.msra.mxu0 0
        %1115 = vmatpush.bf16.xpose.msra.mxu0 %v1106
        %1116 = vmatmul.bf16.gmra.mxu0 %v1103
        %v1117 = vpop.f32.mrf.mxu0
        %v1118 = vadd.f32 %v867, %v1117
        %v1119 = vpop.f32.mrf.mxu0
        %1120 = vdwg.mxu0
        %v1121 = vsel %vm871, %v1118, -inf
        %1122 = vmax.xlane.f32.xlu0 %v1121
        %v1123 = vpop.xlane.xlu0 %1122
        %v1124 = vsub.f32 %v1118, %v1123
        %v1125 = vmul.f32 %v1124, 1.442695
        %v1126 = vpow.pop %v1125
        %v1127 = vsel %vm871, %v1126, 0.0
        %1128 = vadd.xlane.f32.xlu0 %v1127
        %v1129 = vpop.xlane.xlu0 %1128
        %v1130 = vrcp.pop %v1129
        %v1131 = vmul.f32 %v1126, %v1130
        %v1132 = vpack.c.bf16 %v1131, %v1131
        %1133 = vrot.lane.b32.xlu0 %v866, 40
        %v1134 = vpop.permute.xlu0 %1133
        %v1136 = vsel %vm871, %v1132, 0
        %v1139 = vsel %vm908, %v1134, 0
        %1141 = vmatpush.bf16.msra.mxu0 0
        %1142 = vmatpush.bf16.msra.mxu0 0
        %1143 = vmatpush.bf16.msra.mxu0 0
        %1144 = vmatpush.bf16.msra.mxu0 0
        %1145 = vmatpush.bf16.msra.mxu0 0
        %1146 = vmatpush.bf16.msra.mxu0 0
        %1147 = vmatpush.bf16.msra.mxu0 0
        %1148 = vmatpush.bf16.msra.mxu0 %v1139
        %1149 = vmatmul.bf16.gmra.mxu0 %v1136
        %v1150 = vpop.f32.mrf.mxu0
        %v1151 = vadd.f32 0.0, %v1150
        %v1152 = vpop.f32.mrf.mxu0
        %1153 = vdwg.mxu0
        %v1154 = vpack.c.bf16 %v1151, %v1151
        %v1156 = vsel %vm871, %v1154, 0
        %v1159 = vsel %vm908, %v864, 0
        %1161 = vmatpush.bf16.msra.mxu0 0
        %1162 = vmatpush.bf16.msra.mxu0 0
        %1163 = vmatpush.bf16.msra.mxu0 0
        %1164 = vmatpush.bf16.msra.mxu0 0
        %1165 = vmatpush.bf16.msra.mxu0 0
        %1166 = vmatpush.bf16.msra.mxu0 0
        %1167 = vmatpush.bf16.msra.mxu0 0
        %1168 = vmatpush.bf16.msra.mxu0 %v1159
        %1169 = vmatmul.bf16.gmra.mxu0 %v1156
        %v1170 = vpop.f32.mrf.mxu0
        %v1171 = vadd.f32 0.0, %v1170
        %v1172 = vpop.f32.mrf.mxu0
        %1173 = vdwg.mxu0
        %v1174 = vadd.f32 %v1097, %v1171
        %1175 = vst.msk [vmem:[#allocation3] sm:$0xff] %vm843, %v1174
        %v1176 = vld [vmem:[#allocation4 + $0x1] sm:$0x1]
        %v1177 = vpack.c.bf16 %v859, %v859
        %v1178 = vperm.slane %v1176, 0
        %1180 = vrot.lane.b32.xlu0 %v1177, 96
        %v1181 = vpop.permute.xlu0 %1180
        %v1183 = vsel %vm871, %v1177, 0
        %v1186 = vsel %vm871, %v1181, 0
        %1188 = vmatpush.bf16.xpose.msra.mxu0 0
        %1189 = vmatpush.bf16.xpose.msra.mxu0 0
        %1190 = vmatpush.bf16.xpose.msra.mxu0 0
        %1191 = vmatpush.bf16.xpose.msra.mxu0 0
        %1192 = vmatpush.bf16.xpose.msra.mxu0 0
        %1193 = vmatpush.bf16.xpose.msra.mxu0 0
        %1194 = vmatpush.bf16.xpose.msra.mxu0 0
        %1195 = vmatpush.bf16.xpose.msra.mxu0 %v1186
        %1196 = vmatmul.bf16.gmra.mxu0 %v1183
        %v1197 = vpop.f32.mrf.mxu0
        %v1198 = vadd.f32 %v1178, %v1197
        %v1199 = vpop.f32.mrf.mxu0
        %1200 = vdwg.mxu0
        %v1201 = vsel %vm871, %v1198, -inf
        %1202 = vmax.xlane.f32.xlu0 %v1201
        %v1203 = vpop.xlane.xlu0 %1202
        %v1204 = vsub.f32 %v1198, %v1203
        %v1205 = vmul.f32 %v1204, 1.442695
        %v1206 = vpow.pop %v1205
        %v1207 = vsel %vm871, %v1206, 0.0
        %1208 = vadd.xlane.f32.xlu0 %v1207
        %v1209 = vpop.xlane.xlu0 %1208
        %v1210 = vrcp.pop %v1209
        %v1211 = vmul.f32 %v1206, %v1210
        %v1212 = vpack.c.bf16 %v1211, %v1211
        %1213 = vrot.lane.b32.xlu0 %v1177, 64
        %v1214 = vpop.permute.xlu0 %1213
        %v1216 = vsel %vm871, %v1212, 0
        %v1219 = vsel %vm908, %v1214, 0
        %1221 = vmatpush.bf16.msra.mxu0 0
        %1222 = vmatpush.bf16.msra.mxu0 0
        %1223 = vmatpush.bf16.msra.mxu0 0
        %1224 = vmatpush.bf16.msra.mxu0 0
        %1225 = vmatpush.bf16.msra.mxu0 0
        %1226 = vmatpush.bf16.msra.mxu0 0
        %1227 = vmatpush.bf16.msra.mxu0 0
        %1228 = vmatpush.bf16.msra.mxu0 %v1219
        %1229 = vmatmul.bf16.gmra.mxu0 %v1216
        %v1230 = vpop.f32.mrf.mxu0
        %v1231 = vadd.f32 0.0, %v1230
        %v1232 = vpop.f32.mrf.mxu0
        %1233 = vdwg.mxu0
        %v1234 = vpack.c.bf16 %v1231, %v1231
        %1235 = vrot.lane.b32.xlu0 %v1177, 120
        %v1236 = vpop.permute.xlu0 %1235
        %1237 = vrot.lane.b32.xlu0 %v1177, 88
        %v1238 = vpop.permute.xlu0 %1237
        %v1240 = vsel %vm871, %v1236, 0
        %v1243 = vsel %vm871, %v1238, 0
        %1245 = vmatpush.bf16.xpose.msra.mxu0 0
        %1246 = vmatpush.bf16.xpose.msra.mxu0 0
        %1247 = vmatpush.bf16.xpose.msra.mxu0 0
        %1248 = vmatpush.bf16.xpose.msra.mxu0 0
        %1249 = vmatpush.bf16.xpose.msra.mxu0 0
        %1250 = vmatpush.bf16.xpose.msra.mxu0 0
        %1251 = vmatpush.bf16.xpose.msra.mxu0 0
        %1252 = vmatpush.bf16.xpose.msra.mxu0 %v1243
        %1253 = vmatmul.bf16.gmra.mxu0 %v1240
        %v1254 = vpop.f32.mrf.mxu0
        %v1255 = vadd.f32 %v1178, %v1254
        %v1256 = vpop.f32.mrf.mxu0
        %1257 = vdwg.mxu0
        %v1258 = vsel %vm871, %v1255, -inf
        %1259 = vmax.xlane.f32.xlu0 %v1258
        %v1260 = vpop.xlane.xlu0 %1259
        %v1261 = vsub.f32 %v1255, %v1260
        %v1262 = vmul.f32 %v1261, 1.442695
        %v1263 = vpow.pop %v1262
        %v1264 = vsel %vm871, %v1263, 0.0
        %1265 = vadd.xlane.f32.xlu0 %v1264
        %v1266 = vpop.xlane.xlu0 %1265
        %v1267 = vrcp.pop %v1266
        %v1268 = vmul.f32 %v1263, %v1267
        %v1269 = vpack.c.bf16 %v1268, %v1268
        %1270 = vrot.lane.b32.xlu0 %v1177, 56
        %v1271 = vpop.permute.xlu0 %1270
        %v1273 = vsel %vm871, %v1269, 0
        %v1276 = vsel %vm908, %v1271, 0
        %1278 = vmatpush.bf16.msra.mxu0 0
        %1279 = vmatpush.bf16.msra.mxu0 0
        %1280 = vmatpush.bf16.msra.mxu0 0
        %1281 = vmatpush.bf16.msra.mxu0 0
        %1282 = vmatpush.bf16.msra.mxu0 0
        %1283 = vmatpush.bf16.msra.mxu0 0
        %1284 = vmatpush.bf16.msra.mxu0 0
        %1285 = vmatpush.bf16.msra.mxu0 %v1276
        %1286 = vmatmul.bf16.gmra.mxu0 %v1273
        %v1287 = vpop.f32.mrf.mxu0
        %v1288 = vadd.f32 0.0, %v1287
        %v1289 = vpop.f32.mrf.mxu0
        %1290 = vdwg.mxu0
        %v1291 = vpack.c.bf16 %v1288, %v1288
        %v1293 = vsel %vm871, %v1291, 0
        %1295 = vmatpush.bf16.msra.mxu0 0
        %1296 = vmatpush.bf16.msra.mxu0 0
        %1297 = vmatpush.bf16.msra.mxu0 0
        %1298 = vmatpush.bf16.msra.mxu0 0
        %1299 = vmatpush.bf16.msra.mxu0 0
        %1300 = vmatpush.bf16.msra.mxu0 0
        %1301 = vmatpush.bf16.msra.mxu0 0
        %1302 = vmatpush.bf16.msra.mxu0 %v987
        %1303 = vmatmul.bf16.gmra.mxu0 %v1293
        %v1304 = vpop.f32.mrf.mxu0
        %v1305 = vadd.f32 0.0, %v1304
        %v1306 = vpop.f32.mrf.mxu0
        %1307 = vdwg.mxu0
        %v1309 = vsel %vm871, %v1234, 0
        %1311 = vmatpush.bf16.msra.mxu0 0
        %1312 = vmatpush.bf16.msra.mxu0 0
        %1313 = vmatpush.bf16.msra.mxu0 0
        %1314 = vmatpush.bf16.msra.mxu0 0
        %1315 = vmatpush.bf16.msra.mxu0 0
        %1316 = vmatpush.bf16.msra.mxu0 0
        %1317 = vmatpush.bf16.msra.mxu0 0
        %1318 = vmatpush.bf16.msra.mxu0 %v1006
        %1319 = vmatmul.bf16.gmra.mxu0 %v1309
        %v1320 = vpop.f32.mrf.mxu0
        %v1321 = vadd.f32 %v1305, %v1320
        %v1322 = vpop.f32.mrf.mxu0
        %1323 = vdwg.mxu0
        %1324 = vrot.lane.b32.xlu0 %v1177, 112
        %v1325 = vpop.permute.xlu0 %1324
        %1326 = vrot.lane.b32.xlu0 %v1177, 80
        %v1327 = vpop.permute.xlu0 %1326
        %v1329 = vsel %vm871, %v1325, 0
        %v1332 = vsel %vm871, %v1327, 0
        %1334 = vmatpush.bf16.xpose.msra.mxu0 0
        %1335 = vmatpush.bf16.xpose.msra.mxu0 0
        %1336 = vmatpush.bf16.xpose.msra.mxu0 0
        %1337 = vmatpush.bf16.xpose.msra.mxu0 0
        %1338 = vmatpush.bf16.xpose.msra.mxu0 0
        %1339 = vmatpush.bf16.xpose.msra.mxu0 0
        %1340 = vmatpush.bf16.xpose.msra.mxu0 0
        %1341 = vmatpush.bf16.xpose.msra.mxu0 %v1332
        %1342 = vmatmul.bf16.gmra.mxu0 %v1329
        %v1343 = vpop.f32.mrf.mxu0
        %v1344 = vadd.f32 %v1178, %v1343
        %v1345 = vpop.f32.mrf.mxu0
        %1346 = vdwg.mxu0
        %v1347 = vsel %vm871, %v1344, -inf
        %1348 = vmax.xlane.f32.xlu0 %v1347
        %v1349 = vpop.xlane.xlu0 %1348
        %v1350 = vsub.f32 %v1344, %v1349
        %v1351 = vmul.f32 %v1350, 1.442695
        %v1352 = vpow.pop %v1351
        %v1353 = vsel %vm871, %v1352, 0.0
        %1354 = vadd.xlane.f32.xlu0 %v1353
        %v1355 = vpop.xlane.xlu0 %1354
        %v1356 = vrcp.pop %v1355
        %v1357 = vmul.f32 %v1352, %v1356
        %v1358 = vpack.c.bf16 %v1357, %v1357
        %1359 = vrot.lane.b32.xlu0 %v1177, 48
        %v1360 = vpop.permute.xlu0 %1359
        %v1362 = vsel %vm871, %v1358, 0
        %v1365 = vsel %vm908, %v1360, 0
        %1367 = vmatpush.bf16.msra.mxu0 0
        %1368 = vmatpush.bf16.msra.mxu0 0
        %1369 = vmatpush.bf16.msra.mxu0 0
        %1370 = vmatpush.bf16.msra.mxu0 0
        %1371 = vmatpush.bf16.msra.mxu0 0
        %1372 = vmatpush.bf16.msra.mxu0 0
        %1373 = vmatpush.bf16.msra.mxu0 0
        %1374 = vmatpush.bf16.msra.mxu0 %v1365
        %1375 = vmatmul.bf16.gmra.mxu0 %v1362
        %v1376 = vpop.f32.mrf.mxu0
        %v1377 = vadd.f32 0.0, %v1376
        %v1378 = vpop.f32.mrf.mxu0
        %1379 = vdwg.mxu0
        %v1380 = vpack.c.bf16 %v1377, %v1377
        %v1382 = vsel %vm871, %v1380, 0
        %1384 = vmatpush.bf16.msra.mxu0 0
        %1385 = vmatpush.bf16.msra.mxu0 0
        %1386 = vmatpush.bf16.msra.mxu0 0
        %1387 = vmatpush.bf16.msra.mxu0 0
        %1388 = vmatpush.bf16.msra.mxu0 0
        %1389 = vmatpush.bf16.msra.mxu0 0
        %1390 = vmatpush.bf16.msra.mxu0 0
        %1391 = vmatpush.bf16.msra.mxu0 %v1082
        %1392 = vmatmul.bf16.gmra.mxu0 %v1382
        %v1393 = vpop.f32.mrf.mxu0
        %v1394 = vadd.f32 0.0, %v1393
        %v1395 = vpop.f32.mrf.mxu0
        %1396 = vdwg.mxu0
        %v1397 = vadd.f32 %v1321, %v1394
        %1398 = vrot.lane.b32.xlu0 %v1177, 104
        %v1399 = vpop.permute.xlu0 %1398
        %1400 = vrot.lane.b32.xlu0 %v1177, 72
        %v1401 = vpop.permute.xlu0 %1400
        %v1403 = vsel %vm871, %v1399, 0
        %v1406 = vsel %vm871, %v1401, 0
        %1408 = vmatpush.bf16.xpose.msra.mxu0 0
        %1409 = vmatpush.bf16.xpose.msra.mxu0 0
        %1410 = vmatpush.bf16.xpose.msra.mxu0 0
        %1411 = vmatpush.bf16.xpose.msra.mxu0 0
        %1412 = vmatpush.bf16.xpose.msra.mxu0 0
        %1413 = vmatpush.bf16.xpose.msra.mxu0 0
        %1414 = vmatpush.bf16.xpose.msra.mxu0 0
        %1415 = vmatpush.bf16.xpose.msra.mxu0 %v1406
        %1416 = vmatmul.bf16.gmra.mxu0 %v1403
        %v1417 = vpop.f32.mrf.mxu0
        %v1418 = vadd.f32 %v1178, %v1417
        %v1419 = vpop.f32.mrf.mxu0
        %1420 = vdwg.mxu0
        %v1421 = vsel %vm871, %v1418, -inf
        %1422 = vmax.xlane.f32.xlu0 %v1421
        %v1423 = vpop.xlane.xlu0 %1422
        %v1424 = vsub.f32 %v1418, %v1423
        %v1425 = vmul.f32 %v1424, 1.442695
        %v1426 = vpow.pop %v1425
        %v1427 = vsel %vm871, %v1426, 0.0
        %1428 = vadd.xlane.f32.xlu0 %v1427
        %v1429 = vpop.xlane.xlu0 %1428
        %v1430 = vrcp.pop %v1429
        %v1431 = vmul.f32 %v1426, %v1430
        %v1432 = vpack.c.bf16 %v1431, %v1431
        %1433 = vrot.lane.b32.xlu0 %v1177, 40
        %v1434 = vpop.permute.xlu0 %1433
        %v1436 = vsel %vm871, %v1432, 0
        %v1439 = vsel %vm908, %v1434, 0
        %1441 = vmatpush.bf16.msra.mxu0 0
        %1442 = vmatpush.bf16.msra.mxu0 0
        %1443 = vmatpush.bf16.msra.mxu0 0
        %1444 = vmatpush.bf16.msra.mxu0 0
        %1445 = vmatpush.bf16.msra.mxu0 0
        %1446 = vmatpush.bf16.msra.mxu0 0
        %1447 = vmatpush.bf16.msra.mxu0 0
        %1448 = vmatpush.bf16.msra.mxu0 %v1439
        %1449 = vmatmul.bf16.gmra.mxu0 %v1436
        %v1450 = vpop.f32.mrf.mxu0
        %v1451 = vadd.f32 0.0, %v1450
        %v1452 = vpop.f32.mrf.mxu0
        %1453 = vdwg.mxu0
        %v1454 = vpack.c.bf16 %v1451, %v1451
        %v1456 = vsel %vm871, %v1454, 0
        %1458 = vmatpush.bf16.msra.mxu0 0
        %1459 = vmatpush.bf16.msra.mxu0 0
        %1460 = vmatpush.bf16.msra.mxu0 0
        %1461 = vmatpush.bf16.msra.mxu0 0
        %1462 = vmatpush.bf16.msra.mxu0 0
        %1463 = vmatpush.bf16.msra.mxu0 0
        %1464 = vmatpush.bf16.msra.mxu0 0
        %1465 = vmatpush.bf16.msra.mxu0 %v1159
        %1466 = vmatmul.bf16.gmra.mxu0 %v1456
        %v1467 = vpop.f32.mrf.mxu0
        %v1468 = vadd.f32 0.0, %v1467
        %v1469 = vpop.f32.mrf.mxu0
        %1470 = vdwg.mxu0
        %v1471 = vadd.f32 %v1397, %v1468
        %1472 = vst.msk [vmem:[#allocation3 + $0x8] sm:$0xff] %vm843, %v1471
        %v1473 = vld [vmem:[%s574] sm:$0x3f]
        %v1474 = vld [vmem:[#allocation3] sm:$0xff]
        %v1475 = vld [vmem:[#allocation3 + $0x8] sm:$0xff]
        %v1476 = vadd.f32 %v820, %v1474
        %v1477 = vadd.f32 %v821, %v1475
        %v1478 = vperm.slane %v1473, 0
        %v1479 = vadd.f32 %v1476, %v1478
        %v1480 = vadd.f32 %v1477, %v1478
        %v1481 = vsel %vm843, %v1479, 0.0
        %1482 = vadd.xlane.f32.xlu0 %v1481
        %v1483 = vpop.xlane.xlu0 %1482
        %v1484 = vsel %vm843, %v1480, 0.0
        %1485 = vadd.xlane.f32.xlu0 %v1484
        %v1486 = vpop.xlane.xlu0 %1485
        %v1487 = vrcp.pop 32.0
        %v1488 = vmul.f32 32.0, %v1487
        %v1489 = vsub.f32 1.0, %v1488
        %v1490 = vmul.f32 %v1487, %v1489
        %v1491 = vadd.f32 %v1487, %v1490
        %vm1492 = vweird.f32 %v1487
        %v1493 = vsel %vm1492, %v1487, %v1491
        %v1494 = vmul.f32 %v1483, %v1493
        %v1495 = vmul.f32 %v1486, %v1493
        %v1496 = vsub.f32 %v1479, %v1494
        %v1497 = vsub.f32 %v1480, %v1495
        %v1498 = vmul.f32 %v1496, %v1496
        %v1499 = vmul.f32 %v1497, %v1497
        %v1500 = vsel %vm843, %v1498, 0.0
        %1501 = vadd.xlane.f32.xlu0 %v1500
        %v1502 = vpop.xlane.xlu0 %1501
        %v1503 = vsel %vm843, %v1499, 0.0
        %1504 = vadd.xlane.f32.xlu0 %v1503
        %v1505 = vpop.xlane.xlu0 %1504
        %v1506 = vmul.f32 %v1502, %v1493
        %v1507 = vmul.f32 %v1505, %v1493
        %v1508 = vadd.f32 %v1506, 1e-05
        %v1509 = vadd.f32 %v1507, 1e-05
        %v1510 = vrsqrt.pop %v1508
        %v1511 = vmul.f32 %v1510, %v1508
        %v1512 = vmul.f32 %v1511, %v1510
        %v1513 = vmul.f32 0.5, %v1512
        %v1514 = vsub.f32 1.5, %v1513
        %v1515 = vmul.f32 %v1510, %v1514
        %vm1516 = vweird.f32 %v1508
        %vm1517 = vweird.f32 %v1510
        %vm1518 = vmor %vm1516, %vm1517
        %v1519 = vsel %vm1518, %v1510, %v1515
        %v1520 = vrsqrt.pop %v1509
        %v1521 = vmul.f32 %v1520, %v1509
        %v1522 = vmul.f32 %v1521, %v1520
        %v1523 = vmul.f32 0.5, %v1522
        %v1524 = vsub.f32 1.5, %v1523
        %v1525 = vmul.f32 %v1520, %v1524
        %vm1526 = vweird.f32 %v1509
        %vm1527 = vweird.f32 %v1520
        %vm1528 = vmor %vm1526, %vm1527
        %v1529 = vsel %vm1528, %v1520, %v1525
        %v1530 = vmul.f32 %v1496, %v1519
        %v1531 = vmul.f32 %v1497, %v1529
        %v1532 = vperm.slane %v1473, 1
        %v1533 = vmul.f32 %v1530, %v1532
        %v1534 = vmul.f32 %v1531, %v1532
        %v1535 = vperm.slane %v1473, 2
        %v1536 = vadd.f32 %v1533, %v1535
        %v1537 = vadd.f32 %v1534, %v1535
        %v1538 = vpack.c.bf16 %v1537, %v1536
        %v1539 = vld [vmem:[%s562] sm:$0xf]
        %v1540 = vld [vmem:[%s562 + $0x4] sm:$0xf]
        %v1541 = vld [vmem:[%s562 + $0x8] sm:$0xf]
        %v1542 = vld [vmem:[%s562 + $0xc] sm:$0xf]
        %v1543 = vld [vmem:[%s565] sm:$0x1]
        %v1545 = vperm.slane %v1543, 0
        %v1551 = vunpack.c.l.b16 %v1539
        %v1552 = vunpack.c.l.b16 %v1540
        %v1553 = vunpack.c.l.b16 %v1541
        %v1554 = vunpack.c.l.b16 %v1542
        %v1555 = vpack.c.b16 %v1552, %v1551
        %v1556 = vpack.c.b16 %v1554, %v1553
        %v1560 = vsel %vm843, %v1538, 0
        %1562 = vmatpush.bf16.msra.mxu0 0
        %1563 = vmatpush.bf16.msra.mxu0 0
        %1564 = vmatpush.bf16.msra.mxu0 0
        %1565 = vmatpush.bf16.msra.mxu0 0
        %1566 = vmatpush.bf16.msra.mxu0 0
        %1567 = vmatpush.bf16.msra.mxu0 0
        %1568 = vmatpush.bf16.msra.mxu0 %v1556
        %1569 = vmatpush.bf16.msra.mxu0 %v1555
        %1570 = vmatmul.bf16.gmra.mxu0 %v1560
        %v1571 = vpop.f32.mrf.mxu0
        %v1572 = vadd.f32 %v1545, %v1571
        %v1573 = vpop.f32.mrf.mxu0
        %v1574 = vadd.f32 %v1545, %v1573
        %1575 = vdwg.mxu0
        %v1576 = vmax.f32 %v1572, 0.0
        %v1577 = vmax.f32 %v1574, 0.0
        %v1578 = vpack.c.bf16 %v1577, %v1576
        %v1579 = vld [vmem:[%s570] sm:$0xf]
        %v1580 = vld [vmem:[%s570 + $0x4] sm:$0xf]
        %v1581 = vld [vmem:[%s570 + $0x8] sm:$0xf]
        %v1582 = vld [vmem:[%s570 + $0xc] sm:$0xf]
        %v1583 = vld [vmem:[%s570 + $0x10] sm:$0xf]
        %v1584 = vld [vmem:[%s570 + $0x14] sm:$0xf]
        %v1585 = vld [vmem:[%s570 + $0x18] sm:$0xf]
        %v1586 = vld [vmem:[%s570 + $0x1c] sm:$0xf]
        %v1587 = vperm.slane %v1473, 3
        %v1596 = vunpack.c.l.b16 %v1579
        %v1597 = vunpack.c.l.b16 %v1580
        %v1598 = vunpack.c.l.b16 %v1581
        %v1599 = vunpack.c.l.b16 %v1582
        %v1600 = vunpack.c.l.b16 %v1583
        %v1601 = vunpack.c.l.b16 %v1584
        %v1602 = vunpack.c.l.b16 %v1585
        %v1603 = vunpack.c.l.b16 %v1586
        %v1604 = vpack.c.b16 %v1597, %v1596
        %v1605 = vpack.c.b16 %v1599, %v1598
        %v1606 = vpack.c.b16 %v1601, %v1600
        %v1607 = vpack.c.b16 %v1603, %v1602
        %vm1612 = vcmask 523264
        %v1614 = vsel %vm1612, %v1578, 0
        %1616 = vmatpush.bf16.msra.mxu0 0
        %1617 = vmatpush.bf16.msra.mxu0 0
        %1618 = vmatpush.bf16.msra.mxu0 0
        %1619 = vmatpush.bf16.msra.mxu0 0
        %1620 = vmatpush.bf16.msra.mxu0 %v1607
        %1621 = vmatpush.bf16.msra.mxu0 %v1606
        %1622 = vmatpush.bf16.msra.mxu0 %v1605
        %1623 = vmatpush.bf16.msra.mxu0 %v1604
        %1624 = vmatmul.bf16.gmra.mxu0 %v1614
        %v1625 = vpop.f32.mrf.mxu0
        %v1626 = vadd.f32 %v1587, %v1625
        %v1627 = vpop.f32.mrf.mxu0
        %v1628 = vadd.f32 %v1587, %v1627
        %1629 = vdwg.mxu0
        %v1630 = vadd.f32 %v1536, %v1626
        %v1631 = vadd.f32 %v1537, %v1628
        %v1632 = vsel %vm843, %v1630, 0.0
        %1633 = vadd.xlane.f32.xlu0 %v1632
        %v1634 = vpop.xlane.xlu0 %1633
        %v1635 = vsel %vm843, %v1631, 0.0
        %1636 = vadd.xlane.f32.xlu0 %v1635
        %v1637 = vpop.xlane.xlu0 %1636
        %v1638 = vmul.f32 %v1634, %v1493
        %v1639 = vmul.f32 %v1637, %v1493
        %v1640 = vsub.f32 %v1630, %v1638
        %v1641 = vsub.f32 %v1631, %v1639
        %v1642 = vmul.f32 %v1640, %v1640
        %v1643 = vmul.f32 %v1641, %v1641
        %v1644 = vsel %vm843, %v1642, 0.0
        %1645 = vadd.xlane.f32.xlu0 %v1644
        %v1646 = vpop.xlane.xlu0 %1645
        %v1647 = vsel %vm843, %v1643, 0.0
        %1648 = vadd.xlane.f32.xlu0 %v1647
        %v1649 = vpop.xlane.xlu0 %1648
        %v1650 = vmul.f32 %v1646, %v1493
        %v1651 = vmul.f32 %v1649, %v1493
        %v1652 = vadd.f32 %v1650, 1e-05
        %v1653 = vadd.f32 %v1651, 1e-05
        %v1654 = vrsqrt.pop %v1652
        %v1655 = vmul.f32 %v1654, %v1652
        %v1656 = vmul.f32 %v1655, %v1654
        %v1657 = vmul.f32 0.5, %v1656
        %v1658 = vsub.f32 1.5, %v1657
        %v1659 = vmul.f32 %v1654, %v1658
        %vm1660 = vweird.f32 %v1652
        %vm1661 = vweird.f32 %v1654
        %vm1662 = vmor %vm1660, %vm1661
        %v1663 = vsel %vm1662, %v1654, %v1659
        %v1664 = vrsqrt.pop %v1653
        %v1665 = vmul.f32 %v1664, %v1653
        %v1666 = vmul.f32 %v1665, %v1664
        %v1667 = vmul.f32 0.5, %v1666
        %v1668 = vsub.f32 1.5, %v1667
        %v1669 = vmul.f32 %v1664, %v1668
        %vm1670 = vweird.f32 %v1653
        %vm1671 = vweird.f32 %v1664
        %vm1672 = vmor %vm1670, %vm1671
        %v1673 = vsel %vm1672, %v1664, %v1669
        %v1674 = vmul.f32 %v1640, %v1663
        %v1675 = vmul.f32 %v1641, %v1673
        %v1676 = vperm.slane %v1473, 4
        %v1677 = vmul.f32 %v1674, %v1676
        %v1678 = vmul.f32 %v1675, %v1676
        %v1679 = vperm.slane %v1473, 5
        %v1680 = vadd.f32 %v1677, %v1679
        %v1681 = vadd.f32 %v1678, %v1679
        %1682 = vst.msk [vmem:[#allocation2] sm:$0xff] %vm843, %v1680
        %1683 = vst.msk [vmem:[#allocation2 + $0x8] sm:$0xff] %vm843, %v1681
        %p1684 = scmp.eq.s32.totalorder %s32, 1
        // Predicated region
        $region73: #{tpu_custom_call.1} parent=67 // pred_check
          %p1685 = pneg %p1684
        $region74: #{tpu_custom_call.1} parent=67 // pred_check_branch
          %1687 = sbr.rel (%p1685) target = $region76
        $region75: #{tpu_custom_call.1} parent=67 // pred_region
          %v1688 = vld [vmem:[#allocation2] sm:$0xff]
          %1689 = vst.msk [vmem:[#allocation5] sm:$0xff] %vm843, %v1688
          %v1690 = vld [vmem:[#allocation2 + $0x8] sm:$0xff]
          %s1691 = scalar_lea.vmem [#allocation5], 8
          %1692 = vst.msk [vmem:[%s1691] sm:$0xff] %vm843, %v1690
        $region76: #{tpu_custom_call.1} parent=67 // pred_fallthru
          _
        // Predicated region
        $region77: #{tpu_custom_call.1} parent=67 // pred_check
          %p1693 = pneg %p349
        $region78: #{tpu_custom_call.1} parent=67 // pred_check_branch
          %1695 = sbr.rel (%p1693) target = $region80
        $region79: #{tpu_custom_call.1} parent=67 // pred_region
          %s1696 = smul.u32 2, %s31
          %1698 = vsyncadd [#allocation6], 0
          %s1699 = smul.addr %s1696, 8
          %s1700 = scalar_lea.hbm %s12, %s1699
          %s1701 = sshll.u32 [#allocation5], 4
          %s1702 = int_to_ptr.vmem [resolvable:$true] %s1701
          %s1703 = sshll.u32 %s1700, 4
          %s1704 = int_to_ptr.hbm [resolvable:$true] %s1703
          %1709 = dma.vmem_to_hbm [thread:$0]  %s1702, 256, %s1704, [#allocation6], 128, 128, 8
        $region80: #{tpu_custom_call.1} parent=67 // pred_fallthru
          _
        // Predicated region
        $region81: #{tpu_custom_call.1} parent=67 // pred_check
          %p1710 = pneg %p375
        $region82: #{tpu_custom_call.1} parent=67 // pred_check_branch
          %1712 = sbr.rel (%p1710) target = $region84
        $region83: #{tpu_custom_call.1} parent=67 // pred_region
          %s1713 = smul.u32 2, %s31
          %1715 = vsyncadd [#allocation8], 0
          %s1716 = scalar_lea.hbm %s13, %s1713
          %s1717 = sshll.u32 [#allocation7], 4
          %s1718 = int_to_ptr.vmem [resolvable:$true] %s1717
          %s1719 = sshll.u32 %s1716, 4
          %s1720 = int_to_ptr.hbm [resolvable:$true] %s1719
          %1725 = dma.vmem_to_hbm [thread:$0]  %s1718, 32, %s1720, [#allocation8], 16, 16, 1
        $region84: #{tpu_custom_call.1} parent=67 // pred_fallthru
          _
        // Predicated region
        $region85: #{tpu_custom_call.1} parent=67 // pred_check
          %p1726 = pneg %p349
        $region86: #{tpu_custom_call.1} parent=67 // pred_check_branch
          %1728 = sbr.rel (%p1726) target = $region88
        $region87: #{tpu_custom_call.1} parent=67 // pred_region
          %1730 = dma.done [#allocation6], 256
        $region88: #{tpu_custom_call.1} parent=67 // pred_fallthru
          _
        // Predicated region
        $region89: #{tpu_custom_call.1} parent=67 // pred_check
          %p1731 = pneg %p375
        $region90: #{tpu_custom_call.1} parent=67 // pred_check_branch
          %1733 = sbr.rel (%p1731) target = $region92
        $region91: #{tpu_custom_call.1} parent=67 // pred_region
          %1735 = dma.done [#allocation8], 32
        $region92: #{tpu_custom_call.1} parent=67 // pred_fallthru
          _
      $region68: #{tpu_custom_call.1} parent=5 // pred_fallthru
        _
      %p1736 = scmp.le.s32.totalorder 2, %s22
      // Predicated region
      $region93: #{tpu_custom_call.1} parent=5 // pred_check
        %p1737 = pneg %p1736
      $region94: #{tpu_custom_call.1} parent=5 // pred_check_branch
        %1739 = sbr.rel (%p1737) target = $region96
      $region95: #{tpu_custom_call.1} parent=5 // pred_region
        %s1740 = ssub.s32 %s22, 2
      $region96: #{tpu_custom_call.1} parent=5 // pred_fallthru
        _
    $region6: #{tpu_custom_call.1} parent=1 // loop_footer
      %s26 = sadd.s32 1, %s22
    $region7: #{tpu_custom_call.1} parent=1 // loop_footer_branch
      %21 = sbr.rel target = $region3
    $region8: #{tpu_custom_call.1} parent=1 // loop_exit
      _
    %1741 = vsyncpa [#allocation6], 1
    %s1742 = scalar_lea.sflag [#allocation6], 1
    %1743 = vsyncpa %s1742, 1
    %1744 = vsyncpa [#allocation8], 1

</llo_original>
